<compile_context>
chip_gen: v5e
topology: v5e:2x2
jax: 0.10.0
libtpu: 0.0.40
codegen_flags: <defaults>
</compile_context>

<pallas_src>
import functools

import jax
import jax.numpy as jnp
from jax.experimental import pallas as pl
from jax.experimental.pallas import tpu as pltpu

_F32 = jnp.float32
_BF16 = jnp.bfloat16


def _newton_recip(x):
    # EUP approximate reciprocal + one Newton step (near-exact, VALU-cheap).
    r = pl.reciprocal(x, approx=True)
    return r * (2.0 - x * r)


def _erf(x):
    # Abramowitz & Stegun 7.1.26, |err| < 1.5e-7; VPU/EUP-friendly ops only.
    p = 0.3275911
    a1, a2, a3, a4, a5 = 0.254829592, -0.284496736, 1.421413741, -1.453152027, 1.061405429
    sgn = jnp.where(x >= 0, 1.0, -1.0)
    ax = jnp.abs(x)
    t = _newton_recip(1.0 + p * ax)
    poly = ((((a5 * t + a4) * t + a3) * t + a2) * t + a1) * t
    return sgn * (1.0 - poly * jnp.exp(-ax * ax))


def _gelu_exact(x):
    return 0.5 * x * (1.0 + _erf(x * 0.7071067811865476))


def gatv2_block_kernel(xt_ref, xl_ref, ee_ref, mask_ref,
                       wr_ref, br_ref, attf_ref, xlblk_ref, bgat_ref,
                       g1_ref, b1_ref, w1_ref, w2_ref, g2_ref, b2_ref,
                       out_ref):
    f32, bf16 = _F32, _BF16
    N, C = xl_ref.shape                 # all nodes (source side), node channels
    Tn = out_ref.shape[0]               # target-node tile size
    H = xlblk_ref.shape[0] // N         # attention heads
    Co = C // H

    x_t = xt_ref[...]                   # (Tn, C) f32: this tile's target nodes (xr + residual)
    xl = xl_ref[...]                    # (N, C)  f32: lin_l(x) for all source nodes (hoisted)

    # --- target-side projection lin_r (MXU, bf16 in / f32 acc) -------------
    xr = jnp.dot(x_t.astype(bf16), wr_ref[...], preferred_element_type=f32) + br_ref[...]

    # --- GATv2 pre-activation, built once, lane-dense over the full C axis --
    t = ee_ref[...].astype(f32) + xl[None, :, :] + xr[:, None, :]          # (Tn, N, C)
    t = jnp.where(t > 0, t, 0.2 * t)                                       # leaky_relu(0.2)
    tm = t * attf_ref[...][None, :, :]                                     # one full-C multiply

    mask = mask_ref[...].astype(f32)                                       # (Tn, N) {0,1}
    neg_inf = jnp.float32(-1e30)

    # --- per-head scores (cheap Co-wide lane reduces) + masked softmax ------
    alphas = []
    for h in range(H):                  # static unroll; H is small
        s = jnp.sum(tm[:, :, h * Co:(h + 1) * Co], axis=-1)                # (Tn, N) f32
        s = jnp.where(mask > 0.5, s, neg_inf)
        m = jnp.max(s, axis=1, keepdims=True)
        p = jnp.exp(s - m) * mask
        alpha = p * pl.reciprocal(jnp.sum(p, axis=1, keepdims=True), approx=True)
        # TODO(synk): attention dropout (atten_dropout_rate) omitted — eval/deterministic.
        alphas.append(alpha)

    # --- single aggregation matmul: (Tn, H*N) @ (H*N, C) --------------------
    alpha_cat = jnp.concatenate(alphas, axis=1).astype(bf16)               # (Tn, H*N)
    gat = jnp.dot(alpha_cat, xlblk_ref[...], preferred_element_type=f32) + bgat_ref[...]

    # --- dropout (identity, eval) + residual + LayerNorm1 (f32) -------------
    # TODO(synk): nn.Dropout(dropout_rate) after the GAT layer omitted — eval mode.
    h1 = gat + x_t
    mu1 = jnp.mean(h1, axis=-1, keepdims=True)
    v1 = jnp.mean(jnp.square(h1 - mu1), axis=-1, keepdims=True)
    h1n = (h1 - mu1) * jax.lax.rsqrt(v1 + 1e-5) * g1_ref[...] + b1_ref[...]

    # --- MLP: Linear(C->2C, no bias) -> GELU -> Linear(2C->C, no bias) ------
    z = jnp.dot(h1n.astype(bf16), w1_ref[...], preferred_element_type=f32)  # (Tn, 2C)
    z = _gelu_exact(z)
    # TODO(synk): nn.Dropout inside the MLP omitted — eval/deterministic.
    z = jnp.dot(z.astype(bf16), w2_ref[...], preferred_element_type=f32)    # (Tn, C)

    # --- residual + LayerNorm2 ----------------------------------------------
    h2 = z + h1n
    mu2 = jnp.mean(h2, axis=-1, keepdims=True)
    v2 = jnp.mean(jnp.square(h2 - mu2), axis=-1, keepdims=True)
    out_ref[...] = (h2 - mu2) * jax.lax.rsqrt(v2 + 1e-5) * g2_ref[...] + b2_ref[...]


def _round_up(x, m):
    return ((x + m - 1) // m) * m


def _tpu_vmem_config():
    """Generation-aware budgets: (vmem_limit_bytes, tile_budget_bytes)."""
    try:
        cap = pltpu.get_tpu_info().vmem_capacity_bytes
    except Exception:
        cap = 64 * 1024 * 1024                       # assume the smallest (v7x per-core)
    if cap >= 96 * 1024 * 1024:                      # v5e / v6e: 128 MiB per TensorCore
        return 100 * 1024 * 1024, 56 * 1024 * 1024
    return 40 * 1024 * 1024, 14 * 1024 * 1024        # v7x: 64 MiB/core, both cores active


def _pick_tile_n(N, C, H, budget_bytes):
    """Largest multiple-of-8 divisor of N whose per-tile working set (incl. lane padding
    and resident weights) fits the budget."""
    if N <= 8:
        return N
    Cp = _round_up(C, 128)
    C2p = _round_up(2 * C, 128)
    Np = _round_up(N, 128)
    HNp = _round_up(H * N, 128)
    resident = (N * Cp * 4                                   # xl (f32)
                + H * N * Cp * 2                             # xl_blk (bf16)
                + (C * Cp + C * C2p + 2 * C * Cp) * 2        # wr, w1, w2 (bf16)
                + 10 * Cp * 4)                               # (1, C) vectors

    def footprint(t):
        streamed = 2 * (t * N * Cp * 2                       # ee tile (bf16), double-buffered
                        + t * Np * 2                         # mask tile (bf16)
                        + t * Cp * 4                         # x tile (f32)
                        + t * Cp * 4)                        # out tile (f32)
        temps = (3 * t * N * Cp * 4                          # ee(f32) / t / tm
                 + (2 * H + 4) * t * Np * 4                  # scores / probs / alphas
                 + t * HNp * 2                               # alpha_cat (bf16)
                 + 8 * t * C2p * 4)                          # MLP intermediates
        return resident + streamed + temps

    cand = (N // 8) * 8
    while cand >= 8:
        if N % cand == 0 and footprint(cand) <= budget_bytes:
            return cand
        cand -= 8
    # TODO(synk): for N with no fitting multiple-of-8 divisor, pad N in the wrapper
    # instead of falling back to a full-extent tile.
    return N


def init_params(key, node_feat_channels, edge_feat_channels, atten_heads):
    """Deterministic synthetic parameter init (shapes follow GATv2Conv_module.__init__)."""
    C, Ed, H = node_feat_channels, edge_feat_channels, atten_heads
    Co = C // H
    ks = jax.random.split(key, 8)
    s = 0.1
    f32 = jnp.float32
    return dict(
        wl=jax.random.normal(ks[0], (C, H * Co), f32) * s,        # lin_l.weight^T
        bl=jax.random.normal(ks[1], (1, H * Co), f32) * s,        # lin_l.bias
        wr=jax.random.normal(ks[2], (C, H * Co), f32) * s,        # lin_r.weight^T
        br=jax.random.normal(ks[3], (1, H * Co), f32) * s,        # lin_r.bias
        we=jax.random.normal(ks[4], (Ed, H * Co), f32) * s,       # lin_edge.weight^T (no bias)
        att=jax.random.normal(ks[5], (H, Co), f32) * s,           # att (1,H,Co) squeezed
        bgat=jax.random.normal(ks[6], (1, H * Co), f32) * s,      # GATv2Conv.bias
        g1=jnp.ones((1, C), f32), b1=jnp.zeros((1, C), f32),      # norm1
        w1=jax.random.normal(ks[7], (C, 2 * C), f32) * s,         # mlp[0].weight^T
        w2=jax.random.normal(jax.random.fold_in(key, 99), (2 * C, C), f32) * s,  # mlp[3].weight^T
        g2=jnp.ones((1, C), f32), b2=jnp.zeros((1, C), f32),      # norm2
    )


@functools.partial(jax.jit, static_argnames=("num_nodes", "tile_n", "vmem_limit_bytes"))
def _gatv2_forward_impl(node_feats, edge_index, edge_attr, params, *,
                        num_nodes, tile_n, vmem_limit_bytes):
    f32, bf16 = _F32, _BF16
    N = num_nodes
    C = node_feats.shape[1]
    H, Co = params["att"].shape
    Tn = tile_n
    grid = (N // Tn,)

    x = node_feats.astype(f32)
    src, dst = edge_index[0], edge_index[1]
    keep = (src != dst).astype(f32)

    # --- hoisted projections (one XLA matmul each; no per-tile redundancy) --
    xl = x @ params["wl"].astype(f32) + params["bl"].astype(f32)            # lin_l(x), (N, C)
    ee_edges = edge_attr.astype(f32) @ params["we"].astype(f32)             # lin_edge, (E, C)

    # add_self_loops(fill_value='mean'): per-TARGET-node mean of incoming (non-self-loop)
    # edge features, pushed through the (linear) lin_edge projection.
    sum_in = jnp.zeros((N, C), f32).at[dst].add(ee_edges * keep[:, None])
    cnt_in = jnp.zeros((N,), f32).at[dst].add(keep)
    mean_ee = sum_in / jnp.maximum(cnt_in, 1.0)[:, None]

    # dense target-major adjacency: lane-dense C-minor edge projections + bf16 mask.
    # TODO(synk): assumes at most one directed edge per (src, dst) pair (duplicates would
    # need true scatter-add message passing / a sparse CSR PrefetchScalarGridSpec kernel).
    ee3 = jnp.zeros((N, N, C), f32).at[dst, src].set(ee_edges * keep[:, None])
    mask = jnp.zeros((N, N), f32).at[dst, src].max(keep)
    diag = jnp.arange(N)
    ee3 = ee3.at[diag, diag].set(mean_ee)          # add_self_loops=True, fill_value='mean'
    mask = mask.at[diag, diag].set(1.0)
    ee3 = ee3.astype(bf16)
    mask = mask.astype(bf16)

    # block-structured xl for the single aggregation matmul: rows [h*N:(h+1)*N] hold xl
    # with only head-h's Co output columns kept (so concat-over-heads is one MXU matmul).
    eye = jnp.eye(H, dtype=f32)
    xl3 = jnp.transpose(xl.reshape(N, H, Co), (1, 0, 2))                    # (H, N, Co)
    xl_blk = (xl3[:, :, None, :] * eye[:, None, :, None]).reshape(H * N, C).astype(bf16)

    attf = params["att"].reshape(1, C).astype(f32)                          # full att vector

    wr = params["wr"].astype(bf16)
    w1 = params["w1"].astype(bf16)
    w2 = params["w2"].astype(bf16)

    inputs = (x, xl, ee3, mask,
              wr, params["br"].astype(f32), attf, xl_blk, params["bgat"].astype(f32),
              params["g1"].astype(f32), params["b1"].astype(f32), w1, w2,
              params["g2"].astype(f32), params["b2"].astype(f32))

    in_specs = [
        pl.BlockSpec((Tn, C), lambda i: (i, 0)),        # target nodes (xr + residual): tiled
        pl.BlockSpec((N, C), lambda i: (0, 0)),         # xl (source side): resident
        pl.BlockSpec((Tn, N, C), lambda i: (i, 0, 0)),  # projected edge feats: streamed
        pl.BlockSpec((Tn, N), lambda i: (i, 0)),        # adjacency mask (bf16): streamed
    ] + [pl.BlockSpec(a.shape, lambda i: (0, 0)) for a in inputs[4:]]       # weights: resident
    out_specs = pl.BlockSpec((Tn, C), lambda i: (i, 0))

    # advisory roofline numbers for the XLA scheduler (residents counted once)
    flops = int(2 * N * C * C                 # lin_r
                + 7 * N * N * C               # build t + leaky_relu + att multiply + reduces
                + 6 * N * N * H               # softmax arithmetic
                + 2 * N * (H * N) * C         # aggregation matmul
                + 8 * N * C * C               # MLP
                + 20 * N * C)                 # LayerNorms / residuals
    transcendentals = int(N * N * H + 4 * N * C)
    bytes_accessed = int(ee3.size * 2 + mask.size * 2 + x.size * 4 + xl.size * 4
                         + xl_blk.size * 2 + N * C * 4
                         + sum(int(a.size) * a.dtype.itemsize for a in inputs[4:]))

    return pl.pallas_call(
        gatv2_block_kernel,
        out_shape=jax.ShapeDtypeStruct((N, C), f32),
        grid=grid,
        in_specs=in_specs,
        out_specs=out_specs,
        compiler_params=pltpu.CompilerParams(
            dimension_semantics=("parallel",),            # v7x: shard tiles over both TCs
            vmem_limit_bytes=vmem_limit_bytes),
        cost_estimate=pl.CostEstimate(flops=flops,
                                      transcendentals=transcendentals,
                                      bytes_accessed=bytes_accessed),
    )(*inputs)


def gatv2_module_forward(node_feats, edge_index, edge_attr, params, *, num_nodes, tile_n=None):
    """Densify the edge list (target-major, self-loops with PyG fill_value='mean'), hoist
    lin_l / lin_edge, then run the fused Pallas kernel over target-node tiles."""
    C = node_feats.shape[1]
    H = params["att"].shape[0]
    vmem_limit, tile_budget = _tpu_vmem_config()
    if tile_n is None:
        tile_n = _pick_tile_n(num_nodes, C, H, tile_budget)
    if num_nodes % tile_n != 0:
        raise ValueError(f"tile_n={tile_n} must divide num_nodes={num_nodes}")
    return _gatv2_forward_impl(node_feats, edge_index, edge_attr, params,
                               num_nodes=num_nodes, tile_n=tile_n,
                               vmem_limit_bytes=vmem_limit)


if __name__ == "__main__":
    key = jax.random.PRNGKey(0)
    N, C, H, Ed, E = 16, 32, 4, 8, 40      # nodes, node channels, heads, edge channels, edges
    # NOTE: for production, pick C (and 2C) as multiples of 128 for lane-dense stores/matmuls.

    k_x, k_e, k_a, k_p = jax.random.split(key, 4)
    node_feats = jax.random.normal(k_x, (N, C), jnp.float32)

    # E unique directed edges, no self-loops.
    all_pairs = jnp.array([(i, j) for i in range(N) for j in range(N) if i != j], dtype=jnp.int32)
    perm = jax.random.permutation(k_e, all_pairs.shape[0])
    sel = all_pairs[perm[:E]]
    edge_index = jnp.stack([sel[:, 0], sel[:, 1]], axis=0)   # row0 = source, row1 = target
    edge_attr = jax.random.normal(k_a, (E, Ed), jnp.float32)

    params = init_params(k_p, C, Ed, H)

    out = gatv2_module_forward(node_feats, edge_index, edge_attr, params,
                               num_nodes=N, tile_n=8)        # grid of 2 target tiles
    out = jax.block_until_ready(out)
    assert out.shape == (N, C)
    assert bool(jnp.all(jnp.isfinite(out)))
    print("KERNEL_OK")
</pallas_src>

<mosaic_0001>
module attributes {stable_mosaic.version = 11 : i64} {
  func.func @gatv2_block_kernel(%arg0: i32, %arg1: memref<8x32xf32, #tpu.memory_space<vmem>>, %arg2: memref<16x32xf32, #tpu.memory_space<vmem>>, %arg3: memref<8x16x32xbf16, #tpu.memory_space<vmem>>, %arg4: memref<8x16xbf16, #tpu.memory_space<vmem>>, %arg5: memref<32x32xbf16, #tpu.memory_space<vmem>>, %arg6: memref<1x32xf32, #tpu.memory_space<vmem>>, %arg7: memref<1x32xf32, #tpu.memory_space<vmem>>, %arg8: memref<64x32xbf16, #tpu.memory_space<vmem>>, %arg9: memref<1x32xf32, #tpu.memory_space<vmem>>, %arg10: memref<1x32xf32, #tpu.memory_space<vmem>>, %arg11: memref<1x32xf32, #tpu.memory_space<vmem>>, %arg12: memref<32x64xbf16, #tpu.memory_space<vmem>>, %arg13: memref<64x32xbf16, #tpu.memory_space<vmem>>, %arg14: memref<1x32xf32, #tpu.memory_space<vmem>>, %arg15: memref<1x32xf32, #tpu.memory_space<vmem>>, %arg16: memref<8x32xf32, #tpu.memory_space<vmem>>) attributes {dimension_semantics = [#tpu.dimension_semantics<parallel>], iteration_bounds = array<i64: 2>, scalar_prefetch = 0 : i64, scratch_operands = 0 : i64, tpu.core_type = #tpu.core_type<tc>, window_params = [{transform_indices = @transform_0, window_bounds = array<i64: 8, 32>}, {pipeline_mode = #tpu.pipeline_mode<synchronous>, transform_indices = @transform_1, window_bounds = array<i64: 16, 32>}, {transform_indices = @transform_2, window_bounds = array<i64: 8, 16, 32>}, {transform_indices = @transform_3, window_bounds = array<i64: 8, 16>}, {pipeline_mode = #tpu.pipeline_mode<synchronous>, transform_indices = @transform_4, window_bounds = array<i64: 32, 32>}, {pipeline_mode = #tpu.pipeline_mode<synchronous>, transform_indices = @transform_5, window_bounds = array<i64: 1, 32>}, {pipeline_mode = #tpu.pipeline_mode<synchronous>, transform_indices = @transform_6, window_bounds = array<i64: 1, 32>}, {pipeline_mode = #tpu.pipeline_mode<synchronous>, transform_indices = @transform_7, window_bounds = array<i64: 64, 32>}, {pipeline_mode = #tpu.pipeline_mode<synchronous>, transform_indices = @transform_8, window_bounds = array<i64: 1, 32>}, {pipeline_mode = #tpu.pipeline_mode<synchronous>, transform_indices = @transform_9, window_bounds = array<i64: 1, 32>}, {pipeline_mode = #tpu.pipeline_mode<synchronous>, transform_indices = @transform_10, window_bounds = array<i64: 1, 32>}, {pipeline_mode = #tpu.pipeline_mode<synchronous>, transform_indices = @transform_11, window_bounds = array<i64: 32, 64>}, {pipeline_mode = #tpu.pipeline_mode<synchronous>, transform_indices = @transform_12, window_bounds = array<i64: 64, 32>}, {pipeline_mode = #tpu.pipeline_mode<synchronous>, transform_indices = @transform_13, window_bounds = array<i64: 1, 32>}, {pipeline_mode = #tpu.pipeline_mode<synchronous>, transform_indices = @transform_14, window_bounds = array<i64: 1, 32>}, {transform_indices = @transform_15, window_bounds = array<i64: 8, 32>}]} {
    %c0 = arith.constant 0 : index
    %c0_0 = arith.constant 0 : index
    %0 = vector.load %arg1[%c0, %c0_0] : memref<8x32xf32, #tpu.memory_space<vmem>>, vector<8x32xf32>
    %c0_1 = arith.constant 0 : index
    %c0_2 = arith.constant 0 : index
    %1 = vector.load %arg2[%c0_1, %c0_2] : memref<16x32xf32, #tpu.memory_space<vmem>>, vector<16x32xf32>
    %2 = arith.truncf %0 : vector<8x32xf32> to vector<8x32xbf16>
    %c0_3 = arith.constant 0 : index
    %c0_4 = arith.constant 0 : index
    %3 = vector.load %arg5[%c0_3, %c0_4] : memref<32x32xbf16, #tpu.memory_space<vmem>>, vector<32x32xbf16>
    %cst = arith.constant dense<0.000000e+00> : vector<8x32xf32>
    %4 = tpu.matmul %2, %3, %cst {dimension_numbers = #tpu.dot_dimension_numbers<[1], [0], [0], [1], [0, 0, 1, 1], [], []>} : vector<8x32xbf16>, vector<32x32xbf16>, vector<8x32xf32> -> vector<8x32xf32>
    %c0_5 = arith.constant 0 : index
    %c0_6 = arith.constant 0 : index
    %5 = vector.load %arg6[%c0_5, %c0_6] : memref<1x32xf32, #tpu.memory_space<vmem>>, vector<1x32xf32>
    %6 = vector.broadcast %5 : vector<1x32xf32> to vector<8x32xf32>
    %7 = arith.addf %4, %6 : vector<8x32xf32>
    %c0_7 = arith.constant 0 : index
    %c0_8 = arith.constant 0 : index
    %c0_9 = arith.constant 0 : index
    %8 = vector.load %arg3[%c0_7, %c0_8, %c0_9] : memref<8x16x32xbf16, #tpu.memory_space<vmem>>, vector<8x16x32xbf16>
    %9 = arith.extf %8 : vector<8x16x32xbf16> to vector<8x16x32xf32>
    %10 = vector.shape_cast %1 : vector<16x32xf32> to vector<1x16x32xf32>
    %11 = vector.broadcast %10 : vector<1x16x32xf32> to vector<8x16x32xf32>
    %12 = arith.addf %9, %11 : vector<8x16x32xf32>
    %13 = vector.shape_cast %7 : vector<8x32xf32> to vector<8x1x32xf32>
    %14 = vector.broadcast %13 : vector<8x1x32xf32> to vector<8x16x32xf32>
    %15 = arith.addf %12, %14 : vector<8x16x32xf32>
    %cst_10 = arith.constant 0.000000e+00 : f32
    %16 = vector.broadcast %cst_10 : f32 to vector<8x16x32xf32>
    %17 = arith.cmpf ogt, %15, %16 : vector<8x16x32xf32>
    %cst_11 = arith.constant 2.000000e-01 : f32
    %18 = vector.broadcast %cst_11 : f32 to vector<8x16x32xf32>
    %19 = arith.mulf %18, %15 : vector<8x16x32xf32>
    %20 = arith.select %17, %15, %19 : vector<8x16x32xi1>, vector<8x16x32xf32>
    %c0_12 = arith.constant 0 : index
    %c0_13 = arith.constant 0 : index
    %21 = vector.load %arg7[%c0_12, %c0_13] : memref<1x32xf32, #tpu.memory_space<vmem>>, vector<1x32xf32>
    %22 = vector.shape_cast %21 : vector<1x32xf32> to vector<1x1x32xf32>
    %23 = vector.broadcast %22 : vector<1x1x32xf32> to vector<8x16x32xf32>
    %24 = arith.mulf %20, %23 : vector<8x16x32xf32>
    %c0_14 = arith.constant 0 : index
    %c0_15 = arith.constant 0 : index
    %25 = vector.load %arg4[%c0_14, %c0_15] : memref<8x16xbf16, #tpu.memory_space<vmem>>, vector<8x16xbf16>
    %26 = arith.extf %25 : vector<8x16xbf16> to vector<8x16xf32>
    %27 = vector.extract_strided_slice %24 {offsets = [0, 0, 0], sizes = [8, 16, 8], strides = [1, 1, 1]} : vector<8x16x32xf32> to vector<8x16x8xf32>
    %cst_16 = arith.constant dense<0.000000e+00> : vector<8x16xf32>
    %28 = vector.multi_reduction <add>, %27, %cst_16 [2] : vector<8x16x8xf32> to vector<8x16xf32>
    %cst_17 = arith.constant 5.000000e-01 : f32
    %29 = vector.broadcast %cst_17 : f32 to vector<8x16xf32>
    %30 = arith.cmpf ogt, %26, %29 : vector<8x16xf32>
    %cst_18 = arith.constant -1.000000e+30 : f32
    %31 = vector.broadcast %cst_18 : f32 to vector<8x16xf32>
    %32 = arith.select %30, %28, %31 : vector<8x16xi1>, vector<8x16xf32>
    %cst_19 = arith.constant dense<0xFF800000> : vector<8xf32>
    %33 = vector.multi_reduction <maximumf>, %32, %cst_19 [1] : vector<8x16xf32> to vector<8xf32>
    %34 = vector.shape_cast %33 : vector<8xf32> to vector<8x1xf32>
    %35 = vector.broadcast %34 : vector<8x1xf32> to vector<8x16xf32>
    %36 = arith.subf %32, %35 : vector<8x16xf32>
    %37 = math.exp %36 : vector<8x16xf32>
    %38 = arith.mulf %37, %26 : vector<8x16xf32>
    %cst_20 = arith.constant dense<0.000000e+00> : vector<8xf32>
    %39 = vector.multi_reduction <add>, %38, %cst_20 [1] : vector<8x16xf32> to vector<8xf32>
    %40 = vector.shape_cast %39 : vector<8xf32> to vector<8x1xf32>
    %41 = tpu.reciprocal %40 {approx = true} : vector<8x1xf32> -> vector<8x1xf32>
    %42 = vector.broadcast %41 : vector<8x1xf32> to vector<8x16xf32>
    %43 = arith.mulf %38, %42 : vector<8x16xf32>
    %44 = vector.extract_strided_slice %24 {offsets = [0, 0, 8], sizes = [8, 16, 8], strides = [1, 1, 1]} : vector<8x16x32xf32> to vector<8x16x8xf32>
    %cst_21 = arith.constant dense<0.000000e+00> : vector<8x16xf32>
    %45 = vector.multi_reduction <add>, %44, %cst_21 [2] : vector<8x16x8xf32> to vector<8x16xf32>
    %cst_22 = arith.constant 5.000000e-01 : f32
    %46 = vector.broadcast %cst_22 : f32 to vector<8x16xf32>
    %47 = arith.cmpf ogt, %26, %46 : vector<8x16xf32>
    %cst_23 = arith.constant -1.000000e+30 : f32
    %48 = vector.broadcast %cst_23 : f32 to vector<8x16xf32>
    %49 = arith.select %47, %45, %48 : vector<8x16xi1>, vector<8x16xf32>
    %cst_24 = arith.constant dense<0xFF800000> : vector<8xf32>
    %50 = vector.multi_reduction <maximumf>, %49, %cst_24 [1] : vector<8x16xf32> to vector<8xf32>
    %51 = vector.shape_cast %50 : vector<8xf32> to vector<8x1xf32>
    %52 = vector.broadcast %51 : vector<8x1xf32> to vector<8x16xf32>
    %53 = arith.subf %49, %52 : vector<8x16xf32>
    %54 = math.exp %53 : vector<8x16xf32>
    %55 = arith.mulf %54, %26 : vector<8x16xf32>
    %cst_25 = arith.constant dense<0.000000e+00> : vector<8xf32>
    %56 = vector.multi_reduction <add>, %55, %cst_25 [1] : vector<8x16xf32> to vector<8xf32>
    %57 = vector.shape_cast %56 : vector<8xf32> to vector<8x1xf32>
    %58 = tpu.reciprocal %57 {approx = true} : vector<8x1xf32> -> vector<8x1xf32>
    %59 = vector.broadcast %58 : vector<8x1xf32> to vector<8x16xf32>
    %60 = arith.mulf %55, %59 : vector<8x16xf32>
    %61 = vector.extract_strided_slice %24 {offsets = [0, 0, 16], sizes = [8, 16, 8], strides = [1, 1, 1]} : vector<8x16x32xf32> to vector<8x16x8xf32>
    %cst_26 = arith.constant dense<0.000000e+00> : vector<8x16xf32>
    %62 = vector.multi_reduction <add>, %61, %cst_26 [2] : vector<8x16x8xf32> to vector<8x16xf32>
    %cst_27 = arith.constant 5.000000e-01 : f32
    %63 = vector.broadcast %cst_27 : f32 to vector<8x16xf32>
    %64 = arith.cmpf ogt, %26, %63 : vector<8x16xf32>
    %cst_28 = arith.constant -1.000000e+30 : f32
    %65 = vector.broadcast %cst_28 : f32 to vector<8x16xf32>
    %66 = arith.select %64, %62, %65 : vector<8x16xi1>, vector<8x16xf32>
    %cst_29 = arith.constant dense<0xFF800000> : vector<8xf32>
    %67 = vector.multi_reduction <maximumf>, %66, %cst_29 [1] : vector<8x16xf32> to vector<8xf32>
    %68 = vector.shape_cast %67 : vector<8xf32> to vector<8x1xf32>
    %69 = vector.broadcast %68 : vector<8x1xf32> to vector<8x16xf32>
    %70 = arith.subf %66, %69 : vector<8x16xf32>
    %71 = math.exp %70 : vector<8x16xf32>
    %72 = arith.mulf %71, %26 : vector<8x16xf32>
    %cst_30 = arith.constant dense<0.000000e+00> : vector<8xf32>
    %73 = vector.multi_reduction <add>, %72, %cst_30 [1] : vector<8x16xf32> to vector<8xf32>
    %74 = vector.shape_cast %73 : vector<8xf32> to vector<8x1xf32>
    %75 = tpu.reciprocal %74 {approx = true} : vector<8x1xf32> -> vector<8x1xf32>
    %76 = vector.broadcast %75 : vector<8x1xf32> to vector<8x16xf32>
    %77 = arith.mulf %72, %76 : vector<8x16xf32>
    %78 = vector.extract_strided_slice %24 {offsets = [0, 0, 24], sizes = [8, 16, 8], strides = [1, 1, 1]} : vector<8x16x32xf32> to vector<8x16x8xf32>
    %cst_31 = arith.constant dense<0.000000e+00> : vector<8x16xf32>
    %79 = vector.multi_reduction <add>, %78, %cst_31 [2] : vector<8x16x8xf32> to vector<8x16xf32>
    %cst_32 = arith.constant 5.000000e-01 : f32
    %80 = vector.broadcast %cst_32 : f32 to vector<8x16xf32>
    %81 = arith.cmpf ogt, %26, %80 : vector<8x16xf32>
    %cst_33 = arith.constant -1.000000e+30 : f32
    %82 = vector.broadcast %cst_33 : f32 to vector<8x16xf32>
    %83 = arith.select %81, %79, %82 : vector<8x16xi1>, vector<8x16xf32>
    %cst_34 = arith.constant dense<0xFF800000> : vector<8xf32>
    %84 = vector.multi_reduction <maximumf>, %83, %cst_34 [1] : vector<8x16xf32> to vector<8xf32>
    %85 = vector.shape_cast %84 : vector<8xf32> to vector<8x1xf32>
    %86 = vector.broadcast %85 : vector<8x1xf32> to vector<8x16xf32>
    %87 = arith.subf %83, %86 : vector<8x16xf32>
    %88 = math.exp %87 : vector<8x16xf32>
    %89 = arith.mulf %88, %26 : vector<8x16xf32>
    %cst_35 = arith.constant dense<0.000000e+00> : vector<8xf32>
    %90 = vector.multi_reduction <add>, %89, %cst_35 [1] : vector<8x16xf32> to vector<8xf32>
    %91 = vector.shape_cast %90 : vector<8xf32> to vector<8x1xf32>
    %92 = tpu.reciprocal %91 {approx = true} : vector<8x1xf32> -> vector<8x1xf32>
    %93 = vector.broadcast %92 : vector<8x1xf32> to vector<8x16xf32>
    %94 = arith.mulf %89, %93 : vector<8x16xf32>
    %95 = tpu.concatenate %43, %60, %77, %94 in 1 : vector<8x16xf32>, vector<8x16xf32>, vector<8x16xf32>, vector<8x16xf32> -> vector<8x64xf32>
    %96 = arith.truncf %95 : vector<8x64xf32> to vector<8x64xbf16>
    %c0_36 = arith.constant 0 : index
    %c0_37 = arith.constant 0 : index
    %97 = vector.load %arg8[%c0_36, %c0_37] : memref<64x32xbf16, #tpu.memory_space<vmem>>, vector<64x32xbf16>
    %cst_38 = arith.constant dense<0.000000e+00> : vector<8x32xf32>
    %98 = tpu.matmul %96, %97, %cst_38 {dimension_numbers = #tpu.dot_dimension_numbers<[1], [0], [0], [1], [0, 0, 1, 1], [], []>} : vector<8x64xbf16>, vector<64x32xbf16>, vector<8x32xf32> -> vector<8x32xf32>
    %c0_39 = arith.constant 0 : index
    %c0_40 = arith.constant 0 : index
    %99 = vector.load %arg9[%c0_39, %c0_40] : memref<1x32xf32, #tpu.memory_space<vmem>>, vector<1x32xf32>
    %100 = vector.broadcast %99 : vector<1x32xf32> to vector<8x32xf32>
    %101 = arith.addf %98, %100 : vector<8x32xf32>
    %102 = arith.addf %101, %0 : vector<8x32xf32>
    %cst_41 = arith.constant dense<0.000000e+00> : vector<8xf32>
    %103 = vector.multi_reduction <add>, %102, %cst_41 [1] : vector<8x32xf32> to vector<8xf32>
    %104 = vector.shape_cast %103 : vector<8xf32> to vector<8x1xf32>
    %cst_42 = arith.constant 3.200000e+01 : f32
    %105 = vector.broadcast %cst_42 : f32 to vector<8x1xf32>
    %106 = arith.divf %104, %105 : vector<8x1xf32>
    %107 = vector.broadcast %106 : vector<8x1xf32> to vector<8x32xf32>
    %108 = arith.subf %102, %107 : vector<8x32xf32>
    %109 = arith.mulf %108, %108 : vector<8x32xf32>
    %cst_43 = arith.constant dense<0.000000e+00> : vector<8xf32>
    %110 = vector.multi_reduction <add>, %109, %cst_43 [1] : vector<8x32xf32> to vector<8xf32>
    %111 = vector.shape_cast %110 : vector<8xf32> to vector<8x1xf32>
    %cst_44 = arith.constant 3.200000e+01 : f32
    %112 = vector.broadcast %cst_44 : f32 to vector<8x1xf32>
    %113 = arith.divf %111, %112 : vector<8x1xf32>
    %114 = vector.broadcast %106 : vector<8x1xf32> to vector<8x32xf32>
    %115 = arith.subf %102, %114 : vector<8x32xf32>
    %cst_45 = arith.constant 9.99999974E-6 : f32
    %116 = vector.broadcast %cst_45 : f32 to vector<8x1xf32>
    %117 = arith.addf %113, %116 : vector<8x1xf32>
    %118 = math.rsqrt %117 : vector<8x1xf32>
    %119 = vector.broadcast %118 : vector<8x1xf32> to vector<8x32xf32>
    %120 = arith.mulf %115, %119 : vector<8x32xf32>
    %c0_46 = arith.constant 0 : index
    %c0_47 = arith.constant 0 : index
    %121 = vector.load %arg10[%c0_46, %c0_47] : memref<1x32xf32, #tpu.memory_space<vmem>>, vector<1x32xf32>
    %122 = vector.broadcast %121 : vector<1x32xf32> to vector<8x32xf32>
    %123 = arith.mulf %120, %122 : vector<8x32xf32>
    %c0_48 = arith.constant 0 : index
    %c0_49 = arith.constant 0 : index
    %124 = vector.load %arg11[%c0_48, %c0_49] : memref<1x32xf32, #tpu.memory_space<vmem>>, vector<1x32xf32>
    %125 = vector.broadcast %124 : vector<1x32xf32> to vector<8x32xf32>
    %126 = arith.addf %123, %125 : vector<8x32xf32>
    %127 = arith.truncf %126 : vector<8x32xf32> to vector<8x32xbf16>
    %c0_50 = arith.constant 0 : index
    %c0_51 = arith.constant 0 : index
    %128 = vector.load %arg12[%c0_50, %c0_51] : memref<32x64xbf16, #tpu.memory_space<vmem>>, vector<32x64xbf16>
    %cst_52 = arith.constant dense<0.000000e+00> : vector<8x64xf32>
    %129 = tpu.matmul %127, %128, %cst_52 {dimension_numbers = #tpu.dot_dimension_numbers<[1], [0], [0], [1], [0, 0, 1, 1], [], []>} : vector<8x32xbf16>, vector<32x64xbf16>, vector<8x64xf32> -> vector<8x64xf32>
    %cst_53 = arith.constant 5.000000e-01 : f32
    %130 = vector.broadcast %cst_53 : f32 to vector<8x64xf32>
    %131 = arith.mulf %130, %129 : vector<8x64xf32>
    %cst_54 = arith.constant 0.707106769 : f32
    %132 = vector.broadcast %cst_54 : f32 to vector<8x64xf32>
    %133 = arith.mulf %129, %132 : vector<8x64xf32>
    %cst_55 = arith.constant 0.000000e+00 : f32
    %134 = vector.broadcast %cst_55 : f32 to vector<8x64xf32>
    %135 = arith.cmpf oge, %133, %134 : vector<8x64xf32>
    %cst_56 = arith.constant 1.000000e+00 : f32
    %cst_57 = arith.constant -1.000000e+00 : f32
    %136 = vector.broadcast %cst_56 : f32 to vector<8x64xf32>
    %137 = vector.broadcast %cst_57 : f32 to vector<8x64xf32>
    %138 = arith.select %135, %136, %137 : vector<8x64xi1>, vector<8x64xf32>
    %139 = math.absf %133 : vector<8x64xf32>
    %cst_58 = arith.constant 0.327591091 : f32
    %140 = vector.broadcast %cst_58 : f32 to vector<8x64xf32>
    %141 = arith.mulf %140, %139 : vector<8x64xf32>
    %cst_59 = arith.constant 1.000000e+00 : f32
    %142 = vector.broadcast %cst_59 : f32 to vector<8x64xf32>
    %143 = arith.addf %142, %141 : vector<8x64xf32>
    %144 = tpu.reciprocal %143 {approx = true} : vector<8x64xf32> -> vector<8x64xf32>
    %145 = arith.mulf %143, %144 : vector<8x64xf32>
    %cst_60 = arith.constant 2.000000e+00 : f32
    %146 = vector.broadcast %cst_60 : f32 to vector<8x64xf32>
    %147 = arith.subf %146, %145 : vector<8x64xf32>
    %148 = arith.mulf %144, %147 : vector<8x64xf32>
    %cst_61 = arith.constant 1.06140542 : f32
    %149 = vector.broadcast %cst_61 : f32 to vector<8x64xf32>
    %150 = arith.mulf %149, %148 : vector<8x64xf32>
    %cst_62 = arith.constant -1.45315206 : f32
    %151 = vector.broadcast %cst_62 : f32 to vector<8x64xf32>
    %152 = arith.addf %150, %151 : vector<8x64xf32>
    %153 = arith.mulf %152, %148 : vector<8x64xf32>
    %cst_63 = arith.constant 1.42141378 : f32
    %154 = vector.broadcast %cst_63 : f32 to vector<8x64xf32>
    %155 = arith.addf %153, %154 : vector<8x64xf32>
    %156 = arith.mulf %155, %148 : vector<8x64xf32>
    %cst_64 = arith.constant -0.284496725 : f32
    %157 = vector.broadcast %cst_64 : f32 to vector<8x64xf32>
    %158 = arith.addf %156, %157 : vector<8x64xf32>
    %159 = arith.mulf %158, %148 : vector<8x64xf32>
    %cst_65 = arith.constant 0.254829586 : f32
    %160 = vector.broadcast %cst_65 : f32 to vector<8x64xf32>
    %161 = arith.addf %159, %160 : vector<8x64xf32>
    %162 = arith.mulf %161, %148 : vector<8x64xf32>
    %cst_66 = arith.constant 0.000000e+00 : f32
    %163 = vector.broadcast %cst_66 : f32 to vector<8x64xf32>
    %164 = arith.subf %163, %139 : vector<8x64xf32>
    %165 = arith.mulf %164, %139 : vector<8x64xf32>
    %166 = math.exp %165 : vector<8x64xf32>
    %167 = arith.mulf %162, %166 : vector<8x64xf32>
    %cst_67 = arith.constant 1.000000e+00 : f32
    %168 = vector.broadcast %cst_67 : f32 to vector<8x64xf32>
    %169 = arith.subf %168, %167 : vector<8x64xf32>
    %170 = arith.mulf %138, %169 : vector<8x64xf32>
    %cst_68 = arith.constant 1.000000e+00 : f32
    %171 = vector.broadcast %cst_68 : f32 to vector<8x64xf32>
    %172 = arith.addf %171, %170 : vector<8x64xf32>
    %173 = arith.mulf %131, %172 : vector<8x64xf32>
    %174 = arith.truncf %173 : vector<8x64xf32> to vector<8x64xbf16>
    %c0_69 = arith.constant 0 : index
    %c0_70 = arith.constant 0 : index
    %175 = vector.load %arg13[%c0_69, %c0_70] : memref<64x32xbf16, #tpu.memory_space<vmem>>, vector<64x32xbf16>
    %cst_71 = arith.constant dense<0.000000e+00> : vector<8x32xf32>
    %176 = tpu.matmul %174, %175, %cst_71 {dimension_numbers = #tpu.dot_dimension_numbers<[1], [0], [0], [1], [0, 0, 1, 1], [], []>} : vector<8x64xbf16>, vector<64x32xbf16>, vector<8x32xf32> -> vector<8x32xf32>
    %177 = arith.addf %176, %126 : vector<8x32xf32>
    %cst_72 = arith.constant dense<0.000000e+00> : vector<8xf32>
    %178 = vector.multi_reduction <add>, %177, %cst_72 [1] : vector<8x32xf32> to vector<8xf32>
    %179 = vector.shape_cast %178 : vector<8xf32> to vector<8x1xf32>
    %cst_73 = arith.constant 3.200000e+01 : f32
    %180 = vector.broadcast %cst_73 : f32 to vector<8x1xf32>
    %181 = arith.divf %179, %180 : vector<8x1xf32>
    %182 = vector.broadcast %181 : vector<8x1xf32> to vector<8x32xf32>
    %183 = arith.subf %177, %182 : vector<8x32xf32>
    %184 = arith.mulf %183, %183 : vector<8x32xf32>
    %cst_74 = arith.constant dense<0.000000e+00> : vector<8xf32>
    %185 = vector.multi_reduction <add>, %184, %cst_74 [1] : vector<8x32xf32> to vector<8xf32>
    %186 = vector.shape_cast %185 : vector<8xf32> to vector<8x1xf32>
    %cst_75 = arith.constant 3.200000e+01 : f32
    %187 = vector.broadcast %cst_75 : f32 to vector<8x1xf32>
    %188 = arith.divf %186, %187 : vector<8x1xf32>
    %189 = vector.broadcast %181 : vector<8x1xf32> to vector<8x32xf32>
    %190 = arith.subf %177, %189 : vector<8x32xf32>
    %cst_76 = arith.constant 9.99999974E-6 : f32
    %191 = vector.broadcast %cst_76 : f32 to vector<8x1xf32>
    %192 = arith.addf %188, %191 : vector<8x1xf32>
    %193 = math.rsqrt %192 : vector<8x1xf32>
    %194 = vector.broadcast %193 : vector<8x1xf32> to vector<8x32xf32>
    %195 = arith.mulf %190, %194 : vector<8x32xf32>
    %c0_77 = arith.constant 0 : index
    %c0_78 = arith.constant 0 : index
    %196 = vector.load %arg14[%c0_77, %c0_78] : memref<1x32xf32, #tpu.memory_space<vmem>>, vector<1x32xf32>
    %197 = vector.broadcast %196 : vector<1x32xf32> to vector<8x32xf32>
    %198 = arith.mulf %195, %197 : vector<8x32xf32>
    %c0_79 = arith.constant 0 : index
    %c0_80 = arith.constant 0 : index
    %199 = vector.load %arg15[%c0_79, %c0_80] : memref<1x32xf32, #tpu.memory_space<vmem>>, vector<1x32xf32>
    %200 = vector.broadcast %199 : vector<1x32xf32> to vector<8x32xf32>
    %201 = arith.addf %198, %200 : vector<8x32xf32>
    %c0_81 = arith.constant 0 : index
    %c0_82 = arith.constant 0 : index
    %202 = vector.load %arg16[%c0_81, %c0_82] : memref<8x32xf32, #tpu.memory_space<vmem>>, vector<8x32xf32>
    tpu.vector_store %arg16[%c0_81, %c0_82], %201 {strides = array<i32>} : memref<8x32xf32, #tpu.memory_space<vmem>>, vector<8x32xf32>,
    return
  }
  func.func @transform_0(%arg0: i32) -> (i32, i32) {
    %c0_i32 = arith.constant 0 : i32
    %c0_i32_0 = arith.constant 0 : i32
    return %arg0, %c0_i32 : i32, i32
  }
  func.func @transform_1(%arg0: i32) -> (i32, i32) {
    %c0_i32 = arith.constant 0 : i32
    %c0_i32_0 = arith.constant 0 : i32
    %c0_i32_1 = arith.constant 0 : i32
    return %c0_i32, %c0_i32_0 : i32, i32
  }
  func.func @transform_2(%arg0: i32) -> (i32, i32, i32) {
    %c0_i32 = arith.constant 0 : i32
    %c0_i32_0 = arith.constant 0 : i32
    %c0_i32_1 = arith.constant 0 : i32
    return %arg0, %c0_i32, %c0_i32_0 : i32, i32, i32
  }
  func.func @transform_3(%arg0: i32) -> (i32, i32) {
    %c0_i32 = arith.constant 0 : i32
    %c0_i32_0 = arith.constant 0 : i32
    return %arg0, %c0_i32 : i32, i32
  }
  func.func @transform_4(%arg0: i32) -> (i32, i32) {
    %c0_i32 = arith.constant 0 : i32
    %c0_i32_0 = arith.constant 0 : i32
    %c0_i32_1 = arith.constant 0 : i32
    return %c0_i32, %c0_i32_0 : i32, i32
  }
  func.func @transform_5(%arg0: i32) -> (i32, i32) {
    %c0_i32 = arith.constant 0 : i32
    %c0_i32_0 = arith.constant 0 : i32
    %c0_i32_1 = arith.constant 0 : i32
    return %c0_i32, %c0_i32_0 : i32, i32
  }
  func.func @transform_6(%arg0: i32) -> (i32, i32) {
    %c0_i32 = arith.constant 0 : i32
    %c0_i32_0 = arith.constant 0 : i32
    %c0_i32_1 = arith.constant 0 : i32
    return %c0_i32, %c0_i32_0 : i32, i32
  }
  func.func @transform_7(%arg0: i32) -> (i32, i32) {
    %c0_i32 = arith.constant 0 : i32
    %c0_i32_0 = arith.constant 0 : i32
    %c0_i32_1 = arith.constant 0 : i32
    return %c0_i32, %c0_i32_0 : i32, i32
  }
  func.func @transform_8(%arg0: i32) -> (i32, i32) {
    %c0_i32 = arith.constant 0 : i32
    %c0_i32_0 = arith.constant 0 : i32
    %c0_i32_1 = arith.constant 0 : i32
    return %c0_i32, %c0_i32_0 : i32, i32
  }
  func.func @transform_9(%arg0: i32) -> (i32, i32) {
    %c0_i32 = arith.constant 0 : i32
    %c0_i32_0 = arith.constant 0 : i32
    %c0_i32_1 = arith.constant 0 : i32
    return %c0_i32, %c0_i32_0 : i32, i32
  }
  func.func @transform_10(%arg0: i32) -> (i32, i32) {
    %c0_i32 = arith.constant 0 : i32
    %c0_i32_0 = arith.constant 0 : i32
    %c0_i32_1 = arith.constant 0 : i32
    return %c0_i32, %c0_i32_0 : i32, i32
  }
  func.func @transform_11(%arg0: i32) -> (i32, i32) {
    %c0_i32 = arith.constant 0 : i32
    %c0_i32_0 = arith.constant 0 : i32
    %c0_i32_1 = arith.constant 0 : i32
    return %c0_i32, %c0_i32_0 : i32, i32
  }
  func.func @transform_12(%arg0: i32) -> (i32, i32) {
    %c0_i32 = arith.constant 0 : i32
    %c0_i32_0 = arith.constant 0 : i32
    %c0_i32_1 = arith.constant 0 : i32
    return %c0_i32, %c0_i32_0 : i32, i32
  }
  func.func @transform_13(%arg0: i32) -> (i32, i32) {
    %c0_i32 = arith.constant 0 : i32
    %c0_i32_0 = arith.constant 0 : i32
    %c0_i32_1 = arith.constant 0 : i32
    return %c0_i32, %c0_i32_0 : i32, i32
  }
  func.func @transform_14(%arg0: i32) -> (i32, i32) {
    %c0_i32 = arith.constant 0 : i32
    %c0_i32_0 = arith.constant 0 : i32
    %c0_i32_1 = arith.constant 0 : i32
    return %c0_i32, %c0_i32_0 : i32, i32
  }
  func.func @transform_15(%arg0: i32) -> (i32, i32) {
    %c0_i32 = arith.constant 0 : i32
    %c0_i32_0 = arith.constant 0 : i32
    return %arg0, %c0_i32 : i32, i32
  }
}

</mosaic_0001>

<llo_original>
// kernel: _gatv2_forward_impl.1
$region0: #{_gatv2_forward_impl.1}
  #allocation0 [shape = 'u32[]', space=smem, size = 0x4, offset = 0x4, fixed_abs, tag = 'smem constant byte address 0x4 - core index']
  #allocation1 [shape = 'u32[72,128]{1,0:T(1,128)}', space=vmem, size = 0x9000, scoped, tag = 'internal scratch']
  %s0 = inlined_call_operand.vmem [shape: f32[16,32], index: 0, kind: input, shape index: {}]
  %s1 = inlined_call_operand.vmem [shape: f32[16,32], index: 1, kind: input, shape index: {}]
  %s2 = inlined_call_operand.vmem [shape: bf16[16,16,32], index: 2, kind: input, shape index: {}]
  %s3 = inlined_call_operand.vmem [shape: bf16[16,16], index: 3, kind: input, shape index: {}]
  %s4 = inlined_call_operand.vmem [shape: bf16[32,32], index: 4, kind: input, shape index: {}]
  %s5 = inlined_call_operand.vmem [shape: f32[1,32], index: 5, kind: input, shape index: {}]
  %s6 = inlined_call_operand.vmem [shape: f32[1,32], index: 6, kind: input, shape index: {}]
  %s7 = inlined_call_operand.vmem [shape: bf16[64,32], index: 7, kind: input, shape index: {}]
  %s8 = inlined_call_operand.vmem [shape: f32[1,32], index: 8, kind: input, shape index: {}]
  %s9 = inlined_call_operand.vmem [shape: f32[1,32], index: 9, kind: input, shape index: {}]
  %s10 = inlined_call_operand.vmem [shape: f32[1,32], index: 10, kind: input, shape index: {}]
  %s11 = inlined_call_operand.vmem [shape: bf16[32,64], index: 11, kind: input, shape index: {}]
  %s12 = inlined_call_operand.vmem [shape: bf16[64,32], index: 12, kind: input, shape index: {}]
  %s13 = inlined_call_operand.vmem [shape: f32[1,32], index: 13, kind: input, shape index: {}]
  %s14 = inlined_call_operand.vmem [shape: f32[1,32], index: 14, kind: input, shape index: {}]
  %s15 = inlined_call_operand.hbm [shape: f32[16,32], index: 15, kind: output, shape index: {}]
  %s16 = sld [smem:[#allocation0]]
  $region93: #{_gatv2_forward_impl.1} parent=0
    _
  %s18 = ssub.s32 1, %s16
  %s19 = scalar_select 0, %s18, %s16
  $region1: #{_gatv2_forward_impl.1} parent=0
    #allocation2 [shape = 'u8[8192]{0}', space=vmem, size = 0x2000, scoped, tag = 'output window, operand 0']
    #allocation3 [shape = 's32[2]{0}', space=sflag, size = 0x8, scoped, tag = 'scoped memory for _gatv2_forward_impl.1']
    %20 = vsyncpa [#allocation3], 0
    %s21 = scalar_lea.sflag [#allocation3], 1
    %22 = vsyncpa %s21, 0
    loop: start=0, step=1, limit=4
    $region2: #{_gatv2_forward_impl.1} parent=1 // loop_pre_header
      _
    $region3: #{_gatv2_forward_impl.1} parent=1 // loop_header
      %s24 = sphi 0, %s28
      %p25 = scmp.ge.s32.totalorder %s24, 4
      %s34 = sphi 0, %s36
      %s37 = sphi 0, %s34
      %s38 = sphi 0, %s37
      %s54 = sphi 0, %s38
      %s58 = sphi 0, %s58
      %s60 = sphi 0, %s58
      %s61 = sphi 0, %s60
      %s75 = sphi 0, %s61
      %s81 = sphi 0, %s83
      %s84 = sphi 0, %s81
      %s85 = sphi 0, %s84
      %s101 = sphi 0, %s85
      %s107 = sphi 0, %s109
      %s110 = sphi 0, %s107
      %s111 = sphi 0, %s110
      %s127 = sphi 0, %s111
      %s131 = sphi 0, %s131
      %s133 = sphi 0, %s131
      %s134 = sphi 0, %s133
      %s148 = sphi 0, %s134
      %s152 = sphi 0, %s152
      %s154 = sphi 0, %s152
      %s155 = sphi 0, %s154
      %s169 = sphi 0, %s155
      %s173 = sphi 0, %s173
      %s175 = sphi 0, %s173
      %s176 = sphi 0, %s175
      %s190 = sphi 0, %s176
      %s194 = sphi 0, %s194
      %s196 = sphi 0, %s194
      %s197 = sphi 0, %s196
      %s211 = sphi 0, %s197
      %s215 = sphi 0, %s215
      %s217 = sphi 0, %s215
      %s218 = sphi 0, %s217
      %s232 = sphi 0, %s218
      %s236 = sphi 0, %s236
      %s238 = sphi 0, %s236
      %s239 = sphi 0, %s238
      %s253 = sphi 0, %s239
      %s257 = sphi 0, %s257
      %s259 = sphi 0, %s257
      %s260 = sphi 0, %s259
      %s274 = sphi 0, %s260
      %s278 = sphi 0, %s278
      %s280 = sphi 0, %s278
      %s281 = sphi 0, %s280
      %s295 = sphi 0, %s281
      %s299 = sphi 0, %s299
      %s301 = sphi 0, %s299
      %s302 = sphi 0, %s301
      %s316 = sphi 0, %s302
      %s320 = sphi 0, %s320
      %s322 = sphi 0, %s320
      %s323 = sphi 0, %s322
      %s337 = sphi 0, %s323
      %s341 = sphi 0, %s341
      %s343 = sphi 0, %s341
      %s344 = sphi 0, %s343
      %s358 = sphi 0, %s344
      %s364 = sphi 0, %s366
      %s367 = sphi 0, %s364
      %s368 = sphi 0, %s367
      %s384 = sphi 0, %s368
    $region4: #{_gatv2_forward_impl.1} parent=1 // loop_header_branch
      %27 = sbr.rel (%p25) target = $region8
    $region5: #{_gatv2_forward_impl.1} parent=1 // loop_body
      %s29 = ssub.s32 %s24, 1
      %s30 = ssub.s32 %s24, 2
      %s31 = sadd.s32 %s24, 1
      %s32 = ssub.s32 %s24, %s31
      %p33 = scmp.eq.s32.totalorder %s32, 0
      %s35 = sadd.s32 %s34, 1
      %s36 = scalar_select %p33, %s34, %s35
      %p39 = pneg %p33
      %p40 = scmp.eq.s32.totalorder %s24, 1
      %p41 = por %p39, %p40
      %p42 = scmp.ne.s32.totalorder %s34, %s37
      %p43 = scmp.eq.s32.totalorder %s24, 0
      %p44 = por %p42, %p43
      %p45 = scmp.ne.s32.totalorder %s34, %s37
      %p46 = scmp.eq.s32.totalorder %s29, 1
      %p47 = por %p45, %p46
      %p48 = scmp.ne.s32.totalorder %s37, %s38
      %p49 = scmp.eq.s32.totalorder %s29, 0
      %p50 = por %p48, %p49
      %p51 = scmp.ne.s32.totalorder %s37, %s38
      %p52 = scmp.eq.s32.totalorder %s30, 1
      %p53 = por %p51, %p52
      %p55 = scmp.ne.s32.totalorder %s38, %s54
      %p56 = scmp.eq.s32.totalorder %s30, 0
      %p57 = por %p55, %p56
      %s59 = sadd.s32 %s58, 1
      %p62 = scmp.eq.s32.totalorder %s24, 1
      %p63 = scmp.ne.s32.totalorder %s58, %s60
      %p64 = scmp.eq.s32.totalorder %s24, 0
      %p65 = por %p63, %p64
      %p66 = scmp.ne.s32.totalorder %s58, %s60
      %p67 = scmp.eq.s32.totalorder %s29, 1
      %p68 = por %p66, %p67
      %p69 = scmp.ne.s32.totalorder %s60, %s61
      %p70 = scmp.eq.s32.totalorder %s29, 0
      %p71 = por %p69, %p70
      %p72 = scmp.ne.s32.totalorder %s60, %s61
      %p73 = scmp.eq.s32.totalorder %s30, 1
      %p74 = por %p72, %p73
      %p76 = scmp.ne.s32.totalorder %s61, %s75
      %p77 = scmp.eq.s32.totalorder %s30, 0
      %p78 = por %p76, %p77
      %s79 = ssub.s32 %s24, %s31
      %p80 = scmp.eq.s32.totalorder %s79, 0
      %s82 = sadd.s32 %s81, 1
      %s83 = scalar_select %p80, %s81, %s82
      %p86 = pneg %p80
      %p87 = scmp.eq.s32.totalorder %s24, 1
      %p88 = por %p86, %p87
      %p89 = scmp.ne.s32.totalorder %s81, %s84
      %p90 = scmp.eq.s32.totalorder %s24, 0
      %p91 = por %p89, %p90
      %p92 = scmp.ne.s32.totalorder %s81, %s84
      %p93 = scmp.eq.s32.totalorder %s29, 1
      %p94 = por %p92, %p93
      %p95 = scmp.ne.s32.totalorder %s84, %s85
      %p96 = scmp.eq.s32.totalorder %s29, 0
      %p97 = por %p95, %p96
      %p98 = scmp.ne.s32.totalorder %s84, %s85
      %p99 = scmp.eq.s32.totalorder %s30, 1
      %p100 = por %p98, %p99
      %p102 = scmp.ne.s32.totalorder %s85, %s101
      %p103 = scmp.eq.s32.totalorder %s30, 0
      %p104 = por %p102, %p103
      %s105 = ssub.s32 %s24, %s31
      %p106 = scmp.eq.s32.totalorder %s105, 0
      %s108 = sadd.s32 %s107, 1
      %s109 = scalar_select %p106, %s107, %s108
      %p112 = pneg %p106
      %p113 = scmp.eq.s32.totalorder %s24, 1
      %p114 = por %p112, %p113
      %p115 = scmp.ne.s32.totalorder %s107, %s110
      %p116 = scmp.eq.s32.totalorder %s24, 0
      %p117 = por %p115, %p116
      %p118 = scmp.ne.s32.totalorder %s107, %s110
      %p119 = scmp.eq.s32.totalorder %s29, 1
      %p120 = por %p118, %p119
      %p121 = scmp.ne.s32.totalorder %s110, %s111
      %p122 = scmp.eq.s32.totalorder %s29, 0
      %p123 = por %p121, %p122
      %p124 = scmp.ne.s32.totalorder %s110, %s111
      %p125 = scmp.eq.s32.totalorder %s30, 1
      %p126 = por %p124, %p125
      %p128 = scmp.ne.s32.totalorder %s111, %s127
      %p129 = scmp.eq.s32.totalorder %s30, 0
      %p130 = por %p128, %p129
      %s132 = sadd.s32 %s131, 1
      %p135 = scmp.eq.s32.totalorder %s24, 1
      %p136 = scmp.ne.s32.totalorder %s131, %s133
      %p137 = scmp.eq.s32.totalorder %s24, 0
      %p138 = por %p136, %p137
      %p139 = scmp.ne.s32.totalorder %s131, %s133
      %p140 = scmp.eq.s32.totalorder %s29, 1
      %p141 = por %p139, %p140
      %p142 = scmp.ne.s32.totalorder %s133, %s134
      %p143 = scmp.eq.s32.totalorder %s29, 0
      %p144 = por %p142, %p143
      %p145 = scmp.ne.s32.totalorder %s133, %s134
      %p146 = scmp.eq.s32.totalorder %s30, 1
      %p147 = por %p145, %p146
      %p149 = scmp.ne.s32.totalorder %s134, %s148
      %p150 = scmp.eq.s32.totalorder %s30, 0
      %p151 = por %p149, %p150
      %s153 = sadd.s32 %s152, 1
      %p156 = scmp.eq.s32.totalorder %s24, 1
      %p157 = scmp.ne.s32.totalorder %s152, %s154
      %p158 = scmp.eq.s32.totalorder %s24, 0
      %p159 = por %p157, %p158
      %p160 = scmp.ne.s32.totalorder %s152, %s154
      %p161 = scmp.eq.s32.totalorder %s29, 1
      %p162 = por %p160, %p161
      %p163 = scmp.ne.s32.totalorder %s154, %s155
      %p164 = scmp.eq.s32.totalorder %s29, 0
      %p165 = por %p163, %p164
      %p166 = scmp.ne.s32.totalorder %s154, %s155
      %p167 = scmp.eq.s32.totalorder %s30, 1
      %p168 = por %p166, %p167
      %p170 = scmp.ne.s32.totalorder %s155, %s169
      %p171 = scmp.eq.s32.totalorder %s30, 0
      %p172 = por %p170, %p171
      %s174 = sadd.s32 %s173, 1
      %p177 = scmp.eq.s32.totalorder %s24, 1
      %p178 = scmp.ne.s32.totalorder %s173, %s175
      %p179 = scmp.eq.s32.totalorder %s24, 0
      %p180 = por %p178, %p179
      %p181 = scmp.ne.s32.totalorder %s173, %s175
      %p182 = scmp.eq.s32.totalorder %s29, 1
      %p183 = por %p181, %p182
      %p184 = scmp.ne.s32.totalorder %s175, %s176
      %p185 = scmp.eq.s32.totalorder %s29, 0
      %p186 = por %p184, %p185
      %p187 = scmp.ne.s32.totalorder %s175, %s176
      %p188 = scmp.eq.s32.totalorder %s30, 1
      %p189 = por %p187, %p188
      %p191 = scmp.ne.s32.totalorder %s176, %s190
      %p192 = scmp.eq.s32.totalorder %s30, 0
      %p193 = por %p191, %p192
      %s195 = sadd.s32 %s194, 1
      %p198 = scmp.eq.s32.totalorder %s24, 1
      %p199 = scmp.ne.s32.totalorder %s194, %s196
      %p200 = scmp.eq.s32.totalorder %s24, 0
      %p201 = por %p199, %p200
      %p202 = scmp.ne.s32.totalorder %s194, %s196
      %p203 = scmp.eq.s32.totalorder %s29, 1
      %p204 = por %p202, %p203
      %p205 = scmp.ne.s32.totalorder %s196, %s197
      %p206 = scmp.eq.s32.totalorder %s29, 0
      %p207 = por %p205, %p206
      %p208 = scmp.ne.s32.totalorder %s196, %s197
      %p209 = scmp.eq.s32.totalorder %s30, 1
      %p210 = por %p208, %p209
      %p212 = scmp.ne.s32.totalorder %s197, %s211
      %p213 = scmp.eq.s32.totalorder %s30, 0
      %p214 = por %p212, %p213
      %s216 = sadd.s32 %s215, 1
      %p219 = scmp.eq.s32.totalorder %s24, 1
      %p220 = scmp.ne.s32.totalorder %s215, %s217
      %p221 = scmp.eq.s32.totalorder %s24, 0
      %p222 = por %p220, %p221
      %p223 = scmp.ne.s32.totalorder %s215, %s217
      %p224 = scmp.eq.s32.totalorder %s29, 1
      %p225 = por %p223, %p224
      %p226 = scmp.ne.s32.totalorder %s217, %s218
      %p227 = scmp.eq.s32.totalorder %s29, 0
      %p228 = por %p226, %p227
      %p229 = scmp.ne.s32.totalorder %s217, %s218
      %p230 = scmp.eq.s32.totalorder %s30, 1
      %p231 = por %p229, %p230
      %p233 = scmp.ne.s32.totalorder %s218, %s232
      %p234 = scmp.eq.s32.totalorder %s30, 0
      %p235 = por %p233, %p234
      %s237 = sadd.s32 %s236, 1
      %p240 = scmp.eq.s32.totalorder %s24, 1
      %p241 = scmp.ne.s32.totalorder %s236, %s238
      %p242 = scmp.eq.s32.totalorder %s24, 0
      %p243 = por %p241, %p242
      %p244 = scmp.ne.s32.totalorder %s236, %s238
      %p245 = scmp.eq.s32.totalorder %s29, 1
      %p246 = por %p244, %p245
      %p247 = scmp.ne.s32.totalorder %s238, %s239
      %p248 = scmp.eq.s32.totalorder %s29, 0
      %p249 = por %p247, %p248
      %p250 = scmp.ne.s32.totalorder %s238, %s239
      %p251 = scmp.eq.s32.totalorder %s30, 1
      %p252 = por %p250, %p251
      %p254 = scmp.ne.s32.totalorder %s239, %s253
      %p255 = scmp.eq.s32.totalorder %s30, 0
      %p256 = por %p254, %p255
      %s258 = sadd.s32 %s257, 1
      %p261 = scmp.eq.s32.totalorder %s24, 1
      %p262 = scmp.ne.s32.totalorder %s257, %s259
      %p263 = scmp.eq.s32.totalorder %s24, 0
      %p264 = por %p262, %p263
      %p265 = scmp.ne.s32.totalorder %s257, %s259
      %p266 = scmp.eq.s32.totalorder %s29, 1
      %p267 = por %p265, %p266
      %p268 = scmp.ne.s32.totalorder %s259, %s260
      %p269 = scmp.eq.s32.totalorder %s29, 0
      %p270 = por %p268, %p269
      %p271 = scmp.ne.s32.totalorder %s259, %s260
      %p272 = scmp.eq.s32.totalorder %s30, 1
      %p273 = por %p271, %p272
      %p275 = scmp.ne.s32.totalorder %s260, %s274
      %p276 = scmp.eq.s32.totalorder %s30, 0
      %p277 = por %p275, %p276
      %s279 = sadd.s32 %s278, 1
      %p282 = scmp.eq.s32.totalorder %s24, 1
      %p283 = scmp.ne.s32.totalorder %s278, %s280
      %p284 = scmp.eq.s32.totalorder %s24, 0
      %p285 = por %p283, %p284
      %p286 = scmp.ne.s32.totalorder %s278, %s280
      %p287 = scmp.eq.s32.totalorder %s29, 1
      %p288 = por %p286, %p287
      %p289 = scmp.ne.s32.totalorder %s280, %s281
      %p290 = scmp.eq.s32.totalorder %s29, 0
      %p291 = por %p289, %p290
      %p292 = scmp.ne.s32.totalorder %s280, %s281
      %p293 = scmp.eq.s32.totalorder %s30, 1
      %p294 = por %p292, %p293
      %p296 = scmp.ne.s32.totalorder %s281, %s295
      %p297 = scmp.eq.s32.totalorder %s30, 0
      %p298 = por %p296, %p297
      %s300 = sadd.s32 %s299, 1
      %p303 = scmp.eq.s32.totalorder %s24, 1
      %p304 = scmp.ne.s32.totalorder %s299, %s301
      %p305 = scmp.eq.s32.totalorder %s24, 0
      %p306 = por %p304, %p305
      %p307 = scmp.ne.s32.totalorder %s299, %s301
      %p308 = scmp.eq.s32.totalorder %s29, 1
      %p309 = por %p307, %p308
      %p310 = scmp.ne.s32.totalorder %s301, %s302
      %p311 = scmp.eq.s32.totalorder %s29, 0
      %p312 = por %p310, %p311
      %p313 = scmp.ne.s32.totalorder %s301, %s302
      %p314 = scmp.eq.s32.totalorder %s30, 1
      %p315 = por %p313, %p314
      %p317 = scmp.ne.s32.totalorder %s302, %s316
      %p318 = scmp.eq.s32.totalorder %s30, 0
      %p319 = por %p317, %p318
      %s321 = sadd.s32 %s320, 1
      %p324 = scmp.eq.s32.totalorder %s24, 1
      %p325 = scmp.ne.s32.totalorder %s320, %s322
      %p326 = scmp.eq.s32.totalorder %s24, 0
      %p327 = por %p325, %p326
      %p328 = scmp.ne.s32.totalorder %s320, %s322
      %p329 = scmp.eq.s32.totalorder %s29, 1
      %p330 = por %p328, %p329
      %p331 = scmp.ne.s32.totalorder %s322, %s323
      %p332 = scmp.eq.s32.totalorder %s29, 0
      %p333 = por %p331, %p332
      %p334 = scmp.ne.s32.totalorder %s322, %s323
      %p335 = scmp.eq.s32.totalorder %s30, 1
      %p336 = por %p334, %p335
      %p338 = scmp.ne.s32.totalorder %s323, %s337
      %p339 = scmp.eq.s32.totalorder %s30, 0
      %p340 = por %p338, %p339
      %s342 = sadd.s32 %s341, 1
      %p345 = scmp.eq.s32.totalorder %s24, 1
      %p346 = scmp.ne.s32.totalorder %s341, %s343
      %p347 = scmp.eq.s32.totalorder %s24, 0
      %p348 = por %p346, %p347
      %p349 = scmp.ne.s32.totalorder %s341, %s343
      %p350 = scmp.eq.s32.totalorder %s29, 1
      %p351 = por %p349, %p350
      %p352 = scmp.ne.s32.totalorder %s343, %s344
      %p353 = scmp.eq.s32.totalorder %s29, 0
      %p354 = por %p352, %p353
      %p355 = scmp.ne.s32.totalorder %s343, %s344
      %p356 = scmp.eq.s32.totalorder %s30, 1
      %p357 = por %p355, %p356
      %p359 = scmp.ne.s32.totalorder %s344, %s358
      %p360 = scmp.eq.s32.totalorder %s30, 0
      %p361 = por %p359, %p360
      %s362 = ssub.s32 %s24, %s31
      %p363 = scmp.eq.s32.totalorder %s362, 0
      %s365 = sadd.s32 %s364, 1
      %s366 = scalar_select %p363, %s364, %s365
      %p369 = pneg %p363
      %p370 = scmp.eq.s32.totalorder %s24, 1
      %p371 = por %p369, %p370
      %p372 = scmp.ne.s32.totalorder %s364, %s367
      %p373 = scmp.eq.s32.totalorder %s24, 0
      %p374 = por %p372, %p373
      %p375 = scmp.ne.s32.totalorder %s364, %s367
      %p376 = scmp.eq.s32.totalorder %s29, 1
      %p377 = por %p375, %p376
      %p378 = scmp.ne.s32.totalorder %s367, %s368
      %p379 = scmp.eq.s32.totalorder %s29, 0
      %p380 = por %p378, %p379
      %p381 = scmp.ne.s32.totalorder %s367, %s368
      %p382 = scmp.eq.s32.totalorder %s30, 1
      %p383 = por %p381, %p382
      %p385 = scmp.ne.s32.totalorder %s368, %s384
      %p386 = scmp.eq.s32.totalorder %s30, 0
      %p387 = por %p385, %p386
      %p388 = scmp.le.s32.totalorder 1, %s24
      %p389 = scmp.lt.s32.totalorder %s24, 3
      %p390 = pnand %p388, %p389
      %p391 = pneg %p390
      // Predicated region
      $region9: #{_gatv2_forward_impl.1} parent=5 // pred_check
        _
      $region10: #{_gatv2_forward_impl.1} parent=5 // pred_check_branch
        %393 = sbr.rel (%p390) target = $region12
      $region11: #{_gatv2_forward_impl.1} parent=5 // pred_region
        %s394 = ssub.s32 %s24, 1
        // Predicated region
        $region13: #{_gatv2_forward_impl.1} parent=11 // pred_check
          %p395 = pneg %p71
        $region14: #{_gatv2_forward_impl.1} parent=11 // pred_check_branch
          %397 = sbr.rel (%p395) target = $region16
        $region15: #{_gatv2_forward_impl.1} parent=11 // pred_region
          _
        $region16: #{_gatv2_forward_impl.1} parent=11 // pred_fallthru
          _
        // Predicated region
        $region17: #{_gatv2_forward_impl.1} parent=11 // pred_check
          %p398 = pneg %p144
        $region18: #{_gatv2_forward_impl.1} parent=11 // pred_check_branch
          %400 = sbr.rel (%p398) target = $region20
        $region19: #{_gatv2_forward_impl.1} parent=11 // pred_region
          _
        $region20: #{_gatv2_forward_impl.1} parent=11 // pred_fallthru
          _
        // Predicated region
        $region21: #{_gatv2_forward_impl.1} parent=11 // pred_check
          %p401 = pneg %p165
        $region22: #{_gatv2_forward_impl.1} parent=11 // pred_check_branch
          %403 = sbr.rel (%p401) target = $region24
        $region23: #{_gatv2_forward_impl.1} parent=11 // pred_region
          _
        $region24: #{_gatv2_forward_impl.1} parent=11 // pred_fallthru
          _
        // Predicated region
        $region25: #{_gatv2_forward_impl.1} parent=11 // pred_check
          %p404 = pneg %p186
        $region26: #{_gatv2_forward_impl.1} parent=11 // pred_check_branch
          %406 = sbr.rel (%p404) target = $region28
        $region27: #{_gatv2_forward_impl.1} parent=11 // pred_region
          _
        $region28: #{_gatv2_forward_impl.1} parent=11 // pred_fallthru
          _
        // Predicated region
        $region29: #{_gatv2_forward_impl.1} parent=11 // pred_check
          %p407 = pneg %p207
        $region30: #{_gatv2_forward_impl.1} parent=11 // pred_check_branch
          %409 = sbr.rel (%p407) target = $region32
        $region31: #{_gatv2_forward_impl.1} parent=11 // pred_region
          _
        $region32: #{_gatv2_forward_impl.1} parent=11 // pred_fallthru
          _
        // Predicated region
        $region33: #{_gatv2_forward_impl.1} parent=11 // pred_check
          %p410 = pneg %p228
        $region34: #{_gatv2_forward_impl.1} parent=11 // pred_check_branch
          %412 = sbr.rel (%p410) target = $region36
        $region35: #{_gatv2_forward_impl.1} parent=11 // pred_region
          _
        $region36: #{_gatv2_forward_impl.1} parent=11 // pred_fallthru
          _
        // Predicated region
        $region37: #{_gatv2_forward_impl.1} parent=11 // pred_check
          %p413 = pneg %p249
        $region38: #{_gatv2_forward_impl.1} parent=11 // pred_check_branch
          %415 = sbr.rel (%p413) target = $region40
        $region39: #{_gatv2_forward_impl.1} parent=11 // pred_region
          _
        $region40: #{_gatv2_forward_impl.1} parent=11 // pred_fallthru
          _
        // Predicated region
        $region41: #{_gatv2_forward_impl.1} parent=11 // pred_check
          %p416 = pneg %p270
        $region42: #{_gatv2_forward_impl.1} parent=11 // pred_check_branch
          %418 = sbr.rel (%p416) target = $region44
        $region43: #{_gatv2_forward_impl.1} parent=11 // pred_region
          _
        $region44: #{_gatv2_forward_impl.1} parent=11 // pred_fallthru
          _
        // Predicated region
        $region45: #{_gatv2_forward_impl.1} parent=11 // pred_check
          %p419 = pneg %p291
        $region46: #{_gatv2_forward_impl.1} parent=11 // pred_check_branch
          %421 = sbr.rel (%p419) target = $region48
        $region47: #{_gatv2_forward_impl.1} parent=11 // pred_region
          _
        $region48: #{_gatv2_forward_impl.1} parent=11 // pred_fallthru
          _
        // Predicated region
        $region49: #{_gatv2_forward_impl.1} parent=11 // pred_check
          %p422 = pneg %p312
        $region50: #{_gatv2_forward_impl.1} parent=11 // pred_check_branch
          %424 = sbr.rel (%p422) target = $region52
        $region51: #{_gatv2_forward_impl.1} parent=11 // pred_region
          _
        $region52: #{_gatv2_forward_impl.1} parent=11 // pred_fallthru
          _
        // Predicated region
        $region53: #{_gatv2_forward_impl.1} parent=11 // pred_check
          %p425 = pneg %p333
        $region54: #{_gatv2_forward_impl.1} parent=11 // pred_check_branch
          %427 = sbr.rel (%p425) target = $region56
        $region55: #{_gatv2_forward_impl.1} parent=11 // pred_region
          _
        $region56: #{_gatv2_forward_impl.1} parent=11 // pred_fallthru
          _
        // Predicated region
        $region57: #{_gatv2_forward_impl.1} parent=11 // pred_check
          %p428 = pneg %p354
        $region58: #{_gatv2_forward_impl.1} parent=11 // pred_check_branch
          %430 = sbr.rel (%p428) target = $region60
        $region59: #{_gatv2_forward_impl.1} parent=11 // pred_region
          _
        $region60: #{_gatv2_forward_impl.1} parent=11 // pred_fallthru
          _
      $region12: #{_gatv2_forward_impl.1} parent=5 // pred_fallthru
        _
      %p431 = scmp.lt.s32.totalorder %s24, 2
      // Predicated region
      $region61: #{_gatv2_forward_impl.1} parent=5 // pred_check
        %p432 = pneg %p431
      $region62: #{_gatv2_forward_impl.1} parent=5 // pred_check_branch
        %434 = sbr.rel (%p432) target = $region64
      $region63: #{_gatv2_forward_impl.1} parent=5 // pred_region
        // Predicated region
        $region65: #{_gatv2_forward_impl.1} parent=63 // pred_check
          %p435 = pneg %p44
        $region66: #{_gatv2_forward_impl.1} parent=63 // pred_check_branch
          %437 = sbr.rel (%p435) target = $region68
        $region67: #{_gatv2_forward_impl.1} parent=63 // pred_region
          %p438 = scmp.lt.s32.totalorder %s24, 1
          %s439 = scalar_select %p438, %s24, 1
          %s440 = smul.addr %s439, 8
          %s441 = scalar_lea.vmem %s0, %s440
        $region68: #{_gatv2_forward_impl.1} parent=63 // pred_fallthru
          _
        // Predicated region
        $region69: #{_gatv2_forward_impl.1} parent=63 // pred_check
          %p442 = pneg %p91
        $region70: #{_gatv2_forward_impl.1} parent=63 // pred_check_branch
          %444 = sbr.rel (%p442) target = $region72
        $region71: #{_gatv2_forward_impl.1} parent=63 // pred_region
          %s445 = smul.u32 8, %s24
          %p446 = scmp.lt.s32.totalorder %s445, 15
          %s447 = scalar_select %p446, %s445, 15
          %s448 = smul.addr %s447, 2
          %s449 = smul.addr %s448, 4
          %s450 = scalar_lea.vmem %s2, %s449
          %s451 = smul.u32 8, %s24
        $region72: #{_gatv2_forward_impl.1} parent=63 // pred_fallthru
          _
        // Predicated region
        $region73: #{_gatv2_forward_impl.1} parent=63 // pred_check
          %p452 = pneg %p117
        $region74: #{_gatv2_forward_impl.1} parent=63 // pred_check_branch
          %454 = sbr.rel (%p452) target = $region76
        $region75: #{_gatv2_forward_impl.1} parent=63 // pred_region
          %p455 = scmp.lt.s32.totalorder %s24, 1
          %s456 = scalar_select %p455, %s24, 1
          %s457 = smul.addr %s456, 4
          %s458 = scalar_lea.vmem %s3, %s457
        $region76: #{_gatv2_forward_impl.1} parent=63 // pred_fallthru
          _
      $region64: #{_gatv2_forward_impl.1} parent=5 // pred_fallthru
        _
      %p459 = scmp.le.s32.totalorder 1, %s24
      %p460 = scmp.lt.s32.totalorder %s24, 3
      %p461 = pnand %p459, %p460
      %p462 = pneg %p461
      // Predicated region
      $region77: #{_gatv2_forward_impl.1} parent=5 // pred_check
        _
      $region78: #{_gatv2_forward_impl.1} parent=5 // pred_check_branch
        %464 = sbr.rel (%p461) target = $region80
      $region79: #{_gatv2_forward_impl.1} parent=5 // pred_region
        %s465 = ssub.s32 %s24, 1
        %p466 = scmp.lt.s32.totalorder %s29, 1
        %s467 = scalar_select %p466, %s29, 1
        %s468 = smul.addr %s467, 8
        %s469 = scalar_lea.vmem %s0, %s468
        %p470 = pneg %p50
        %p471 = pneg %p47
        %p472 = pneg %p71
        %p473 = pneg %p68
        %s474 = smul.u32 8, %s29
        %p475 = scmp.lt.s32.totalorder %s474, 15
        %s476 = scalar_select %p475, %s474, 15
        %s477 = smul.addr %s476, 2
        %s478 = smul.addr %s477, 4
        %s479 = scalar_lea.vmem %s2, %s478
        %p480 = pneg %p97
        %p481 = pneg %p94
        %p482 = scmp.lt.s32.totalorder %s29, 1
        %s483 = scalar_select %p482, %s29, 1
        %s484 = smul.addr %s483, 4
        %s485 = scalar_lea.vmem %s3, %s484
        %p486 = pneg %p123
        %p487 = pneg %p120
        %p488 = pneg %p144
        %p489 = pneg %p141
        %p490 = pneg %p165
        %p491 = pneg %p162
        %p492 = pneg %p186
        %p493 = pneg %p183
        %p494 = pneg %p207
        %p495 = pneg %p204
        %p496 = pneg %p228
        %p497 = pneg %p225
        %p498 = pneg %p249
        %p499 = pneg %p246
        %p500 = pneg %p270
        %p501 = pneg %p267
        %p502 = pneg %p291
        %p503 = pneg %p288
        %p504 = pneg %p312
        %p505 = pneg %p309
        %p506 = pneg %p333
        %p507 = pneg %p330
        %p508 = pneg %p354
        %p509 = pneg %p351
        %p510 = pneg %p380
        %p511 = pneg %p377
        %s512 = sand.u32 %s367, 1
        %s513 = scalar_lea.sflag [#allocation3], %s512
        %s514 = sand.u32 %s367, 1
        %s515 = smul.addr %s514, 8
        %s516 = scalar_lea.vmem [#allocation2], %s515
        %p517 = scmp.lt.s32.totalorder %s29, 1
        %s518 = scalar_select %p517, %s29, 1
        %s519 = smul.addr %s518, 8
        %s520 = scalar_lea.vmem %s0, %s519
        %s521 = smul.u32 8, %s29
        %p522 = scmp.lt.s32.totalorder %s521, 15
        %s523 = scalar_select %p522, %s521, 15
        %s524 = smul.addr %s523, 2
        %s525 = smul.addr %s524, 4
        %s526 = scalar_lea.vmem %s2, %s525
        %s527 = smul.u32 8, %s29
        %p528 = scmp.lt.s32.totalorder %s29, 1
        %s529 = scalar_select %p528, %s29, 1
        %s530 = smul.addr %s529, 4
        %s531 = scalar_lea.vmem %s3, %s530
        %v533 = vld [vmem:[%s520] sm:$0xff]
        %v534 = vld [vmem:[%s1] sm:$0xff]
        %v535 = vld [vmem:[%s1 + $0x8] sm:$0xff]
        %v536 = vpack.c.bf16 %v533, %v533
        %v537 = vld [vmem:[%s4] sm:$0xf]
        %v538 = vld [vmem:[%s4 + $0x4] sm:$0xf]
        %v539 = vld [vmem:[%s4 + $0x8] sm:$0xf]
        %v540 = vld [vmem:[%s4 + $0xc] sm:$0xf]
        %v541 = vld [vmem:[%s5] sm:$0x1]
        %v543 = vperm.slane %v541, 0
        %v549 = vunpack.c.l.b16 %v537
        %v550 = vunpack.c.l.b16 %v538
        %v551 = vunpack.c.l.b16 %v539
        %v552 = vunpack.c.l.b16 %v540
        %v553 = vpack.c.b16 %v550, %v549
        %v554 = vpack.c.b16 %v552, %v551
        %vm557 = vcmask 261120
        %v559 = vsel %vm557, %v536, 0
        %561 = vmatpush.bf16.msra.mxu0 0
        %562 = vmatpush.bf16.msra.mxu0 0
        %563 = vmatpush.bf16.msra.mxu0 0
        %564 = vmatpush.bf16.msra.mxu0 0
        %565 = vmatpush.bf16.msra.mxu0 0
        %566 = vmatpush.bf16.msra.mxu0 0
        %567 = vmatpush.bf16.msra.mxu0 %v554
        %568 = vmatpush.bf16.msra.mxu0 %v553
        %569 = vmatmul.bf16.gmra.mxu0 %v559
        %v570 = vpop.f32.mrf.mxu0
        %v571 = vadd.f32 %v543, %v570
        %v572 = vpop.f32.mrf.mxu0
        %573 = vdwg.mxu0
        %v574 = vld [vmem:[%s526] sm:$0xf]
        %v575 = vld [vmem:[%s526 + $0x4] sm:$0xf]
        %v576 = vld [vmem:[%s526 + $0x8] sm:$0xf]
        %v577 = vld [vmem:[%s526 + $0xc] sm:$0xf]
        %v578 = vld [vmem:[%s526 + $0x10] sm:$0xf]
        %v579 = vld [vmem:[%s526 + $0x14] sm:$0xf]
        %v580 = vld [vmem:[%s526 + $0x18] sm:$0xf]
        %v581 = vld [vmem:[%s526 + $0x1c] sm:$0xf]
        %v582 = vld [vmem:[%s526 + $0x20] sm:$0xf]
        %v583 = vld [vmem:[%s526 + $0x24] sm:$0xf]
        %v584 = vld [vmem:[%s526 + $0x28] sm:$0xf]
        %v585 = vld [vmem:[%s526 + $0x2c] sm:$0xf]
        %v586 = vld [vmem:[%s526 + $0x30] sm:$0xf]
        %v587 = vld [vmem:[%s526 + $0x34] sm:$0xf]
        %v588 = vld [vmem:[%s526 + $0x38] sm:$0xf]
        %v589 = vld [vmem:[%s526 + $0x3c] sm:$0xf]
        %v590 = vunpack.c.l.bf16 %v574
        %v591 = vunpack.c.l.bf16 %v575
        %v592 = vunpack.c.l.bf16 %v576
        %v593 = vunpack.c.l.bf16 %v577
        %v594 = vunpack.c.l.bf16 %v578
        %v595 = vunpack.c.l.bf16 %v579
        %v596 = vunpack.c.l.bf16 %v580
        %v597 = vunpack.c.l.bf16 %v581
        %v598 = vunpack.c.l.bf16 %v582
        %v599 = vunpack.c.l.bf16 %v583
        %v600 = vunpack.c.l.bf16 %v584
        %v601 = vunpack.c.l.bf16 %v585
        %v602 = vunpack.c.l.bf16 %v586
        %v603 = vunpack.c.l.bf16 %v587
        %v604 = vunpack.c.l.bf16 %v588
        %v605 = vunpack.c.l.bf16 %v589
        %v606 = vadd.f32 %v590, %v534
        %v607 = vadd.f32 %v591, %v535
        %v608 = vadd.f32 %v592, %v534
        %v609 = vadd.f32 %v593, %v535
        %v610 = vadd.f32 %v594, %v534
        %v611 = vadd.f32 %v595, %v535
        %v612 = vadd.f32 %v596, %v534
        %v613 = vadd.f32 %v597, %v535
        %v614 = vadd.f32 %v598, %v534
        %v615 = vadd.f32 %v599, %v535
        %v616 = vadd.f32 %v600, %v534
        %v617 = vadd.f32 %v601, %v535
        %v618 = vadd.f32 %v602, %v534
        %v619 = vadd.f32 %v603, %v535
        %v620 = vadd.f32 %v604, %v534
        %v621 = vadd.f32 %v605, %v535
        %v623 = vrot.slane %v571, 1
        %v624 = vrot.slane %v571, 2
        %v625 = vrot.slane %v571, 3
        %v626 = vrot.slane %v571, 4
        %v627 = vrot.slane %v571, 5
        %v628 = vrot.slane %v571, 6
        %v629 = vrot.slane %v571, 7
        %v630 = vperm.slane %v571, 0
        %v631 = vperm.slane %v623, 0
        %v632 = vperm.slane %v624, 0
        %v633 = vperm.slane %v625, 0
        %v634 = vperm.slane %v626, 0
        %v635 = vperm.slane %v627, 0
        %v636 = vperm.slane %v628, 0
        %v637 = vperm.slane %v629, 0
        %v646 = vadd.f32 %v606, %v630
        %v647 = vadd.f32 %v607, %v630
        %v648 = vadd.f32 %v608, %v631
        %v649 = vadd.f32 %v609, %v631
        %v650 = vadd.f32 %v610, %v632
        %v651 = vadd.f32 %v611, %v632
        %v652 = vadd.f32 %v612, %v633
        %v653 = vadd.f32 %v613, %v633
        %v654 = vadd.f32 %v614, %v634
        %v655 = vadd.f32 %v615, %v634
        %v656 = vadd.f32 %v616, %v635
        %v657 = vadd.f32 %v617, %v635
        %v658 = vadd.f32 %v618, %v636
        %v659 = vadd.f32 %v619, %v636
        %v660 = vadd.f32 %v620, %v637
        %v661 = vadd.f32 %v621, %v637
        %vm662 = vcmp.gt.f32.partialorder %v646, 0.0
        %vm663 = vcmp.gt.f32.partialorder %v647, 0.0
        %vm664 = vcmp.gt.f32.partialorder %v648, 0.0
        %vm665 = vcmp.gt.f32.partialorder %v649, 0.0
        %vm666 = vcmp.gt.f32.partialorder %v650, 0.0
        %vm667 = vcmp.gt.f32.partialorder %v651, 0.0
        %vm668 = vcmp.gt.f32.partialorder %v652, 0.0
        %vm669 = vcmp.gt.f32.partialorder %v653, 0.0
        %vm670 = vcmp.gt.f32.partialorder %v654, 0.0
        %vm671 = vcmp.gt.f32.partialorder %v655, 0.0
        %vm672 = vcmp.gt.f32.partialorder %v656, 0.0
        %vm673 = vcmp.gt.f32.partialorder %v657, 0.0
        %vm674 = vcmp.gt.f32.partialorder %v658, 0.0
        %vm675 = vcmp.gt.f32.partialorder %v659, 0.0
        %vm676 = vcmp.gt.f32.partialorder %v660, 0.0
        %vm677 = vcmp.gt.f32.partialorder %v661, 0.0
        %v678 = vmul.f32 %v646, 0.2
        %v679 = vmul.f32 %v647, 0.2
        %v680 = vmul.f32 %v648, 0.2
        %v681 = vmul.f32 %v649, 0.2
        %v682 = vmul.f32 %v650, 0.2
        %v683 = vmul.f32 %v651, 0.2
        %v684 = vmul.f32 %v652, 0.2
        %v685 = vmul.f32 %v653, 0.2
        %v686 = vmul.f32 %v654, 0.2
        %v687 = vmul.f32 %v655, 0.2
        %v688 = vmul.f32 %v656, 0.2
        %v689 = vmul.f32 %v657, 0.2
        %v690 = vmul.f32 %v658, 0.2
        %v691 = vmul.f32 %v659, 0.2
        %v692 = vmul.f32 %v660, 0.2
        %v693 = vmul.f32 %v661, 0.2
        %v694 = vsel %vm662, %v646, %v678
        %v695 = vsel %vm663, %v647, %v679
        %v696 = vsel %vm664, %v648, %v680
        %v697 = vsel %vm665, %v649, %v681
        %v698 = vsel %vm666, %v650, %v682
        %v699 = vsel %vm667, %v651, %v683
        %v700 = vsel %vm668, %v652, %v684
        %v701 = vsel %vm669, %v653, %v685
        %v702 = vsel %vm670, %v654, %v686
        %v703 = vsel %vm671, %v655, %v687
        %v704 = vsel %vm672, %v656, %v688
        %v705 = vsel %vm673, %v657, %v689
        %v706 = vsel %vm674, %v658, %v690
        %v707 = vsel %vm675, %v659, %v691
        %v708 = vsel %vm676, %v660, %v692
        %v709 = vsel %vm677, %v661, %v693
        %v710 = vld [vmem:[%s6] sm:$0x1]
        %v712 = vperm.slane %v710, 0
        %v714 = vmul.f32 %v694, %v712
        %v715 = vmul.f32 %v695, %v712
        %v716 = vmul.f32 %v696, %v712
        %v717 = vmul.f32 %v697, %v712
        %v718 = vmul.f32 %v698, %v712
        %v719 = vmul.f32 %v699, %v712
        %v720 = vmul.f32 %v700, %v712
        %v721 = vmul.f32 %v701, %v712
        %v722 = vmul.f32 %v702, %v712
        %v723 = vmul.f32 %v703, %v712
        %v724 = vmul.f32 %v704, %v712
        %v725 = vmul.f32 %v705, %v712
        %v726 = vmul.f32 %v706, %v712
        %v727 = vmul.f32 %v707, %v712
        %v728 = vmul.f32 %v708, %v712
        %v729 = vmul.f32 %v709, %v712
        %v730 = vld [vmem:[%s531] sm:$0xf]
        %v731 = vunpack.c.l.bf16 %v730
        %vm732 = vcmask 64512
        %v733 = vsel %vm732, %v714, 0.0
        %734 = vadd.xlane.f32.xlu0 %v733
        %v735 = vpop.xlane.xlu0 %734
        %v736 = vsel %vm732, %v715, 0.0
        %737 = vadd.xlane.f32.xlu0 %v736
        %v738 = vpop.xlane.xlu0 %737
        %v739 = vsel %vm732, %v716, 0.0
        %740 = vadd.xlane.f32.xlu0 %v739
        %v741 = vpop.xlane.xlu0 %740
        %v742 = vsel %vm732, %v717, 0.0
        %743 = vadd.xlane.f32.xlu0 %v742
        %v744 = vpop.xlane.xlu0 %743
        %v745 = vsel %vm732, %v718, 0.0
        %746 = vadd.xlane.f32.xlu0 %v745
        %v747 = vpop.xlane.xlu0 %746
        %v748 = vsel %vm732, %v719, 0.0
        %749 = vadd.xlane.f32.xlu0 %v748
        %v750 = vpop.xlane.xlu0 %749
        %v751 = vsel %vm732, %v720, 0.0
        %752 = vadd.xlane.f32.xlu0 %v751
        %v753 = vpop.xlane.xlu0 %752
        %v754 = vsel %vm732, %v721, 0.0
        %755 = vadd.xlane.f32.xlu0 %v754
        %v756 = vpop.xlane.xlu0 %755
        %v757 = vsel %vm732, %v722, 0.0
        %758 = vadd.xlane.f32.xlu0 %v757
        %v759 = vpop.xlane.xlu0 %758
        %v760 = vsel %vm732, %v723, 0.0
        %761 = vadd.xlane.f32.xlu0 %v760
        %v762 = vpop.xlane.xlu0 %761
        %v763 = vsel %vm732, %v724, 0.0
        %764 = vadd.xlane.f32.xlu0 %v763
        %v765 = vpop.xlane.xlu0 %764
        %v766 = vsel %vm732, %v725, 0.0
        %767 = vadd.xlane.f32.xlu0 %v766
        %v768 = vpop.xlane.xlu0 %767
        %v769 = vsel %vm732, %v726, 0.0
        %770 = vadd.xlane.f32.xlu0 %v769
        %v771 = vpop.xlane.xlu0 %770
        %v772 = vsel %vm732, %v727, 0.0
        %773 = vadd.xlane.f32.xlu0 %v772
        %v774 = vpop.xlane.xlu0 %773
        %v775 = vsel %vm732, %v728, 0.0
        %776 = vadd.xlane.f32.xlu0 %v775
        %v777 = vpop.xlane.xlu0 %776
        %v778 = vsel %vm732, %v729, 0.0
        %779 = vadd.xlane.f32.xlu0 %v778
        %v780 = vpop.xlane.xlu0 %779
        %vm781 = vcmp.gt.f32.partialorder %v731, 0.5
        %v798 = vlaneseq
        %v799 = vand.u32 %v798, 127
        %v800 = vperm.slane %v735, %v799
        %v801 = vadd.s32 %v799, 4294967288
        %v802 = vperm.slane %v738, %v801
        %vm803 = vcmask 130112
        %v804 = vsel %vm803, %v802, %v800
        %v805 = vperm.slane %v741, %v799
        %v806 = vperm.slane %v744, %v801
        %v807 = vsel %vm803, %v806, %v805
        %v808 = vperm.slane %v747, %v799
        %v809 = vperm.slane %v750, %v801
        %v810 = vsel %vm803, %v809, %v808
        %v811 = vperm.slane %v753, %v799
        %v812 = vperm.slane %v756, %v801
        %v813 = vsel %vm803, %v812, %v811
        %v814 = vperm.slane %v759, %v799
        %v815 = vperm.slane %v762, %v801
        %v816 = vsel %vm803, %v815, %v814
        %v817 = vperm.slane %v765, %v799
        %v818 = vperm.slane %v768, %v801
        %v819 = vsel %vm803, %v818, %v817
        %v820 = vperm.slane %v771, %v799
        %v821 = vperm.slane %v774, %v801
        %v822 = vsel %vm803, %v821, %v820
        %v823 = vperm.slane %v777, %v799
        %v824 = vperm.slane %v780, %v801
        %v825 = vsel %vm803, %v824, %v823
        %vm826 = vcmask 1041409
        %v827 = vsel %vm826, %v807, %v804
        %vm828 = vcmask 1042434
        %v829 = vsel %vm828, %v810, %v827
        %vm830 = vcmask 1043459
        %v831 = vsel %vm830, %v813, %v829
        %vm832 = vcmask 1044484
        %v833 = vsel %vm832, %v816, %v831
        %vm834 = vcmask 1045509
        %v835 = vsel %vm834, %v819, %v833
        %vm836 = vcmask 1046534
        %v837 = vsel %vm836, %v822, %v835
        %vm838 = vcmask 1047559
        %v839 = vsel %vm838, %v825, %v837
        %v841 = vsel %vm781, %v839, -1e+30
        %vm842 = vcmask 130048
        %v843 = vsel %vm842, %v841, -inf
        %844 = vmax.xlane.f32.xlu0 %v843
        %v845 = vpop.xlane.xlu0 %844
        %v846 = vsub.f32 %v841, %v845
        %v847 = vmul.f32 %v846, 1.442695
        %v848 = vpow.pop %v847
        %v849 = vmul.f32 %v848, %v731
        %v850 = vsel %vm842, %v849, 0.0
        %851 = vadd.xlane.f32.xlu0 %v850
        %v852 = vpop.xlane.xlu0 %851
        %v853 = vrcp.pop %v852
        %v854 = vmul.f32 %v849, %v853
        %871 = vrot.lane.b32.xlu0 %v714, 120
        %v872 = vpop.permute.xlu0 %871
        %873 = vrot.lane.b32.xlu0 %v715, 120
        %v874 = vpop.permute.xlu0 %873
        %875 = vrot.lane.b32.xlu0 %v716, 120
        %v876 = vpop.permute.xlu0 %875
        %877 = vrot.lane.b32.xlu0 %v717, 120
        %v878 = vpop.permute.xlu0 %877
        %879 = vrot.lane.b32.xlu0 %v718, 120
        %v880 = vpop.permute.xlu0 %879
        %881 = vrot.lane.b32.xlu0 %v719, 120
        %v882 = vpop.permute.xlu0 %881
        %883 = vrot.lane.b32.xlu0 %v720, 120
        %v884 = vpop.permute.xlu0 %883
        %885 = vrot.lane.b32.xlu0 %v721, 120
        %v886 = vpop.permute.xlu0 %885
        %887 = vrot.lane.b32.xlu0 %v722, 120
        %v888 = vpop.permute.xlu0 %887
        %889 = vrot.lane.b32.xlu0 %v723, 120
        %v890 = vpop.permute.xlu0 %889
        %891 = vrot.lane.b32.xlu0 %v724, 120
        %v892 = vpop.permute.xlu0 %891
        %893 = vrot.lane.b32.xlu0 %v725, 120
        %v894 = vpop.permute.xlu0 %893
        %895 = vrot.lane.b32.xlu0 %v726, 120
        %v896 = vpop.permute.xlu0 %895
        %897 = vrot.lane.b32.xlu0 %v727, 120
        %v898 = vpop.permute.xlu0 %897
        %899 = vrot.lane.b32.xlu0 %v728, 120
        %v900 = vpop.permute.xlu0 %899
        %901 = vrot.lane.b32.xlu0 %v729, 120
        %v902 = vpop.permute.xlu0 %901
        %v919 = vsel %vm732, %v872, 0.0
        %920 = vadd.xlane.f32.xlu0 %v919
        %v921 = vpop.xlane.xlu0 %920
        %v922 = vsel %vm732, %v874, 0.0
        %923 = vadd.xlane.f32.xlu0 %v922
        %v924 = vpop.xlane.xlu0 %923
        %v925 = vsel %vm732, %v876, 0.0
        %926 = vadd.xlane.f32.xlu0 %v925
        %v927 = vpop.xlane.xlu0 %926
        %v928 = vsel %vm732, %v878, 0.0
        %929 = vadd.xlane.f32.xlu0 %v928
        %v930 = vpop.xlane.xlu0 %929
        %v931 = vsel %vm732, %v880, 0.0
        %932 = vadd.xlane.f32.xlu0 %v931
        %v933 = vpop.xlane.xlu0 %932
        %v934 = vsel %vm732, %v882, 0.0
        %935 = vadd.xlane.f32.xlu0 %v934
        %v936 = vpop.xlane.xlu0 %935
        %v937 = vsel %vm732, %v884, 0.0
        %938 = vadd.xlane.f32.xlu0 %v937
        %v939 = vpop.xlane.xlu0 %938
        %v940 = vsel %vm732, %v886, 0.0
        %941 = vadd.xlane.f32.xlu0 %v940
        %v942 = vpop.xlane.xlu0 %941
        %v943 = vsel %vm732, %v888, 0.0
        %944 = vadd.xlane.f32.xlu0 %v943
        %v945 = vpop.xlane.xlu0 %944
        %v946 = vsel %vm732, %v890, 0.0
        %947 = vadd.xlane.f32.xlu0 %v946
        %v948 = vpop.xlane.xlu0 %947
        %v949 = vsel %vm732, %v892, 0.0
        %950 = vadd.xlane.f32.xlu0 %v949
        %v951 = vpop.xlane.xlu0 %950
        %v952 = vsel %vm732, %v894, 0.0
        %953 = vadd.xlane.f32.xlu0 %v952
        %v954 = vpop.xlane.xlu0 %953
        %v955 = vsel %vm732, %v896, 0.0
        %956 = vadd.xlane.f32.xlu0 %v955
        %v957 = vpop.xlane.xlu0 %956
        %v958 = vsel %vm732, %v898, 0.0
        %959 = vadd.xlane.f32.xlu0 %v958
        %v960 = vpop.xlane.xlu0 %959
        %v961 = vsel %vm732, %v900, 0.0
        %962 = vadd.xlane.f32.xlu0 %v961
        %v963 = vpop.xlane.xlu0 %962
        %v964 = vsel %vm732, %v902, 0.0
        %965 = vadd.xlane.f32.xlu0 %v964
        %v966 = vpop.xlane.xlu0 %965
        %v983 = vperm.slane %v921, %v799
        %v984 = vperm.slane %v924, %v801
        %v985 = vsel %vm803, %v984, %v983
        %v986 = vperm.slane %v927, %v799
        %v987 = vperm.slane %v930, %v801
        %v988 = vsel %vm803, %v987, %v986
        %v989 = vperm.slane %v933, %v799
        %v990 = vperm.slane %v936, %v801
        %v991 = vsel %vm803, %v990, %v989
        %v992 = vperm.slane %v939, %v799
        %v993 = vperm.slane %v942, %v801
        %v994 = vsel %vm803, %v993, %v992
        %v995 = vperm.slane %v945, %v799
        %v996 = vperm.slane %v948, %v801
        %v997 = vsel %vm803, %v996, %v995
        %v998 = vperm.slane %v951, %v799
        %v999 = vperm.slane %v954, %v801
        %v1000 = vsel %vm803, %v999, %v998
        %v1001 = vperm.slane %v957, %v799
        %v1002 = vperm.slane %v960, %v801
        %v1003 = vsel %vm803, %v1002, %v1001
        %v1004 = vperm.slane %v963, %v799
        %v1005 = vperm.slane %v966, %v801
        %v1006 = vsel %vm803, %v1005, %v1004
        %v1007 = vsel %vm826, %v988, %v985
        %v1008 = vsel %vm828, %v991, %v1007
        %v1009 = vsel %vm830, %v994, %v1008
        %v1010 = vsel %vm832, %v997, %v1009
        %v1011 = vsel %vm834, %v1000, %v1010
        %v1012 = vsel %vm836, %v1003, %v1011
        %v1013 = vsel %vm838, %v1006, %v1012
        %v1015 = vsel %vm781, %v1013, -1e+30
        %v1016 = vsel %vm842, %v1015, -inf
        %1017 = vmax.xlane.f32.xlu0 %v1016
        %v1018 = vpop.xlane.xlu0 %1017
        %v1019 = vsub.f32 %v1015, %v1018
        %v1020 = vmul.f32 %v1019, 1.442695
        %v1021 = vpow.pop %v1020
        %v1022 = vmul.f32 %v1021, %v731
        %v1023 = vsel %vm842, %v1022, 0.0
        %1024 = vadd.xlane.f32.xlu0 %v1023
        %v1025 = vpop.xlane.xlu0 %1024
        %v1026 = vrcp.pop %v1025
        %v1027 = vmul.f32 %v1022, %v1026
        %1028 = vrot.lane.b32.xlu0 %v714, 112
        %v1029 = vpop.permute.xlu0 %1028
        %1030 = vrot.lane.b32.xlu0 %v715, 112
        %v1031 = vpop.permute.xlu0 %1030
        %1032 = vrot.lane.b32.xlu0 %v716, 112
        %v1033 = vpop.permute.xlu0 %1032
        %1034 = vrot.lane.b32.xlu0 %v717, 112
        %v1035 = vpop.permute.xlu0 %1034
        %1036 = vrot.lane.b32.xlu0 %v718, 112
        %v1037 = vpop.permute.xlu0 %1036
        %1038 = vrot.lane.b32.xlu0 %v719, 112
        %v1039 = vpop.permute.xlu0 %1038
        %1040 = vrot.lane.b32.xlu0 %v720, 112
        %v1041 = vpop.permute.xlu0 %1040
        %1042 = vrot.lane.b32.xlu0 %v721, 112
        %v1043 = vpop.permute.xlu0 %1042
        %1044 = vrot.lane.b32.xlu0 %v722, 112
        %v1045 = vpop.permute.xlu0 %1044
        %1046 = vrot.lane.b32.xlu0 %v723, 112
        %v1047 = vpop.permute.xlu0 %1046
        %1048 = vrot.lane.b32.xlu0 %v724, 112
        %v1049 = vpop.permute.xlu0 %1048
        %1050 = vrot.lane.b32.xlu0 %v725, 112
        %v1051 = vpop.permute.xlu0 %1050
        %1052 = vrot.lane.b32.xlu0 %v726, 112
        %v1053 = vpop.permute.xlu0 %1052
        %1054 = vrot.lane.b32.xlu0 %v727, 112
        %v1055 = vpop.permute.xlu0 %1054
        %1056 = vrot.lane.b32.xlu0 %v728, 112
        %v1057 = vpop.permute.xlu0 %1056
        %1058 = vrot.lane.b32.xlu0 %v729, 112
        %v1059 = vpop.permute.xlu0 %1058
        %v1076 = vsel %vm732, %v1029, 0.0
        %1077 = vadd.xlane.f32.xlu0 %v1076
        %v1078 = vpop.xlane.xlu0 %1077
        %v1079 = vsel %vm732, %v1031, 0.0
        %1080 = vadd.xlane.f32.xlu0 %v1079
        %v1081 = vpop.xlane.xlu0 %1080
        %v1082 = vsel %vm732, %v1033, 0.0
        %1083 = vadd.xlane.f32.xlu0 %v1082
        %v1084 = vpop.xlane.xlu0 %1083
        %v1085 = vsel %vm732, %v1035, 0.0
        %1086 = vadd.xlane.f32.xlu0 %v1085
        %v1087 = vpop.xlane.xlu0 %1086
        %v1088 = vsel %vm732, %v1037, 0.0
        %1089 = vadd.xlane.f32.xlu0 %v1088
        %v1090 = vpop.xlane.xlu0 %1089
        %v1091 = vsel %vm732, %v1039, 0.0
        %1092 = vadd.xlane.f32.xlu0 %v1091
        %v1093 = vpop.xlane.xlu0 %1092
        %v1094 = vsel %vm732, %v1041, 0.0
        %1095 = vadd.xlane.f32.xlu0 %v1094
        %v1096 = vpop.xlane.xlu0 %1095
        %v1097 = vsel %vm732, %v1043, 0.0
        %1098 = vadd.xlane.f32.xlu0 %v1097
        %v1099 = vpop.xlane.xlu0 %1098
        %v1100 = vsel %vm732, %v1045, 0.0
        %1101 = vadd.xlane.f32.xlu0 %v1100
        %v1102 = vpop.xlane.xlu0 %1101
        %v1103 = vsel %vm732, %v1047, 0.0
        %1104 = vadd.xlane.f32.xlu0 %v1103
        %v1105 = vpop.xlane.xlu0 %1104
        %v1106 = vsel %vm732, %v1049, 0.0
        %1107 = vadd.xlane.f32.xlu0 %v1106
        %v1108 = vpop.xlane.xlu0 %1107
        %v1109 = vsel %vm732, %v1051, 0.0
        %1110 = vadd.xlane.f32.xlu0 %v1109
        %v1111 = vpop.xlane.xlu0 %1110
        %v1112 = vsel %vm732, %v1053, 0.0
        %1113 = vadd.xlane.f32.xlu0 %v1112
        %v1114 = vpop.xlane.xlu0 %1113
        %v1115 = vsel %vm732, %v1055, 0.0
        %1116 = vadd.xlane.f32.xlu0 %v1115
        %v1117 = vpop.xlane.xlu0 %1116
        %v1118 = vsel %vm732, %v1057, 0.0
        %1119 = vadd.xlane.f32.xlu0 %v1118
        %v1120 = vpop.xlane.xlu0 %1119
        %v1121 = vsel %vm732, %v1059, 0.0
        %1122 = vadd.xlane.f32.xlu0 %v1121
        %v1123 = vpop.xlane.xlu0 %1122
        %v1140 = vperm.slane %v1078, %v799
        %v1141 = vperm.slane %v1081, %v801
        %v1142 = vsel %vm803, %v1141, %v1140
        %v1143 = vperm.slane %v1084, %v799
        %v1144 = vperm.slane %v1087, %v801
        %v1145 = vsel %vm803, %v1144, %v1143
        %v1146 = vperm.slane %v1090, %v799
        %v1147 = vperm.slane %v1093, %v801
        %v1148 = vsel %vm803, %v1147, %v1146
        %v1149 = vperm.slane %v1096, %v799
        %v1150 = vperm.slane %v1099, %v801
        %v1151 = vsel %vm803, %v1150, %v1149
        %v1152 = vperm.slane %v1102, %v799
        %v1153 = vperm.slane %v1105, %v801
        %v1154 = vsel %vm803, %v1153, %v1152
        %v1155 = vperm.slane %v1108, %v799
        %v1156 = vperm.slane %v1111, %v801
        %v1157 = vsel %vm803, %v1156, %v1155
        %v1158 = vperm.slane %v1114, %v799
        %v1159 = vperm.slane %v1117, %v801
        %v1160 = vsel %vm803, %v1159, %v1158
        %v1161 = vperm.slane %v1120, %v799
        %v1162 = vperm.slane %v1123, %v801
        %v1163 = vsel %vm803, %v1162, %v1161
        %v1164 = vsel %vm826, %v1145, %v1142
        %v1165 = vsel %vm828, %v1148, %v1164
        %v1166 = vsel %vm830, %v1151, %v1165
        %v1167 = vsel %vm832, %v1154, %v1166
        %v1168 = vsel %vm834, %v1157, %v1167
        %v1169 = vsel %vm836, %v1160, %v1168
        %v1170 = vsel %vm838, %v1163, %v1169
        %v1172 = vsel %vm781, %v1170, -1e+30
        %v1173 = vsel %vm842, %v1172, -inf
        %1174 = vmax.xlane.f32.xlu0 %v1173
        %v1175 = vpop.xlane.xlu0 %1174
        %v1176 = vsub.f32 %v1172, %v1175
        %v1177 = vmul.f32 %v1176, 1.442695
        %v1178 = vpow.pop %v1177
        %v1179 = vmul.f32 %v1178, %v731
        %v1180 = vsel %vm842, %v1179, 0.0
        %1181 = vadd.xlane.f32.xlu0 %v1180
        %v1182 = vpop.xlane.xlu0 %1181
        %v1183 = vrcp.pop %v1182
        %v1184 = vmul.f32 %v1179, %v1183
        %1185 = vrot.lane.b32.xlu0 %v714, 104
        %v1186 = vpop.permute.xlu0 %1185
        %1187 = vrot.lane.b32.xlu0 %v715, 104
        %v1188 = vpop.permute.xlu0 %1187
        %1189 = vrot.lane.b32.xlu0 %v716, 104
        %v1190 = vpop.permute.xlu0 %1189
        %1191 = vrot.lane.b32.xlu0 %v717, 104
        %v1192 = vpop.permute.xlu0 %1191
        %1193 = vrot.lane.b32.xlu0 %v718, 104
        %v1194 = vpop.permute.xlu0 %1193
        %1195 = vrot.lane.b32.xlu0 %v719, 104
        %v1196 = vpop.permute.xlu0 %1195
        %1197 = vrot.lane.b32.xlu0 %v720, 104
        %v1198 = vpop.permute.xlu0 %1197
        %1199 = vrot.lane.b32.xlu0 %v721, 104
        %v1200 = vpop.permute.xlu0 %1199
        %1201 = vrot.lane.b32.xlu0 %v722, 104
        %v1202 = vpop.permute.xlu0 %1201
        %1203 = vrot.lane.b32.xlu0 %v723, 104
        %v1204 = vpop.permute.xlu0 %1203
        %1205 = vrot.lane.b32.xlu0 %v724, 104
        %v1206 = vpop.permute.xlu0 %1205
        %1207 = vrot.lane.b32.xlu0 %v725, 104
        %v1208 = vpop.permute.xlu0 %1207
        %1209 = vrot.lane.b32.xlu0 %v726, 104
        %v1210 = vpop.permute.xlu0 %1209
        %1211 = vrot.lane.b32.xlu0 %v727, 104
        %v1212 = vpop.permute.xlu0 %1211
        %1213 = vrot.lane.b32.xlu0 %v728, 104
        %v1214 = vpop.permute.xlu0 %1213
        %1215 = vrot.lane.b32.xlu0 %v729, 104
        %v1216 = vpop.permute.xlu0 %1215
        %v1233 = vsel %vm732, %v1186, 0.0
        %1234 = vadd.xlane.f32.xlu0 %v1233
        %v1235 = vpop.xlane.xlu0 %1234
        %v1236 = vsel %vm732, %v1188, 0.0
        %1237 = vadd.xlane.f32.xlu0 %v1236
        %v1238 = vpop.xlane.xlu0 %1237
        %v1239 = vsel %vm732, %v1190, 0.0
        %1240 = vadd.xlane.f32.xlu0 %v1239
        %v1241 = vpop.xlane.xlu0 %1240
        %v1242 = vsel %vm732, %v1192, 0.0
        %1243 = vadd.xlane.f32.xlu0 %v1242
        %v1244 = vpop.xlane.xlu0 %1243
        %v1245 = vsel %vm732, %v1194, 0.0
        %1246 = vadd.xlane.f32.xlu0 %v1245
        %v1247 = vpop.xlane.xlu0 %1246
        %v1248 = vsel %vm732, %v1196, 0.0
        %1249 = vadd.xlane.f32.xlu0 %v1248
        %v1250 = vpop.xlane.xlu0 %1249
        %v1251 = vsel %vm732, %v1198, 0.0
        %1252 = vadd.xlane.f32.xlu0 %v1251
        %v1253 = vpop.xlane.xlu0 %1252
        %v1254 = vsel %vm732, %v1200, 0.0
        %1255 = vadd.xlane.f32.xlu0 %v1254
        %v1256 = vpop.xlane.xlu0 %1255
        %v1257 = vsel %vm732, %v1202, 0.0
        %1258 = vadd.xlane.f32.xlu0 %v1257
        %v1259 = vpop.xlane.xlu0 %1258
        %v1260 = vsel %vm732, %v1204, 0.0
        %1261 = vadd.xlane.f32.xlu0 %v1260
        %v1262 = vpop.xlane.xlu0 %1261
        %v1263 = vsel %vm732, %v1206, 0.0
        %1264 = vadd.xlane.f32.xlu0 %v1263
        %v1265 = vpop.xlane.xlu0 %1264
        %v1266 = vsel %vm732, %v1208, 0.0
        %1267 = vadd.xlane.f32.xlu0 %v1266
        %v1268 = vpop.xlane.xlu0 %1267
        %v1269 = vsel %vm732, %v1210, 0.0
        %1270 = vadd.xlane.f32.xlu0 %v1269
        %v1271 = vpop.xlane.xlu0 %1270
        %v1272 = vsel %vm732, %v1212, 0.0
        %1273 = vadd.xlane.f32.xlu0 %v1272
        %v1274 = vpop.xlane.xlu0 %1273
        %v1275 = vsel %vm732, %v1214, 0.0
        %1276 = vadd.xlane.f32.xlu0 %v1275
        %v1277 = vpop.xlane.xlu0 %1276
        %v1278 = vsel %vm732, %v1216, 0.0
        %1279 = vadd.xlane.f32.xlu0 %v1278
        %v1280 = vpop.xlane.xlu0 %1279
        %v1297 = vperm.slane %v1235, %v799
        %v1298 = vperm.slane %v1238, %v801
        %v1299 = vsel %vm803, %v1298, %v1297
        %v1300 = vperm.slane %v1241, %v799
        %v1301 = vperm.slane %v1244, %v801
        %v1302 = vsel %vm803, %v1301, %v1300
        %v1303 = vperm.slane %v1247, %v799
        %v1304 = vperm.slane %v1250, %v801
        %v1305 = vsel %vm803, %v1304, %v1303
        %v1306 = vperm.slane %v1253, %v799
        %v1307 = vperm.slane %v1256, %v801
        %v1308 = vsel %vm803, %v1307, %v1306
        %v1309 = vperm.slane %v1259, %v799
        %v1310 = vperm.slane %v1262, %v801
        %v1311 = vsel %vm803, %v1310, %v1309
        %v1312 = vperm.slane %v1265, %v799
        %v1313 = vperm.slane %v1268, %v801
        %v1314 = vsel %vm803, %v1313, %v1312
        %v1315 = vperm.slane %v1271, %v799
        %v1316 = vperm.slane %v1274, %v801
        %v1317 = vsel %vm803, %v1316, %v1315
        %v1318 = vperm.slane %v1277, %v799
        %v1319 = vperm.slane %v1280, %v801
        %v1320 = vsel %vm803, %v1319, %v1318
        %v1321 = vsel %vm826, %v1302, %v1299
        %v1322 = vsel %vm828, %v1305, %v1321
        %v1323 = vsel %vm830, %v1308, %v1322
        %v1324 = vsel %vm832, %v1311, %v1323
        %v1325 = vsel %vm834, %v1314, %v1324
        %v1326 = vsel %vm836, %v1317, %v1325
        %v1327 = vsel %vm838, %v1320, %v1326
        %v1329 = vsel %vm781, %v1327, -1e+30
        %v1330 = vsel %vm842, %v1329, -inf
        %1331 = vmax.xlane.f32.xlu0 %v1330
        %v1332 = vpop.xlane.xlu0 %1331
        %v1333 = vsub.f32 %v1329, %v1332
        %v1334 = vmul.f32 %v1333, 1.442695
        %v1335 = vpow.pop %v1334
        %v1336 = vmul.f32 %v1335, %v731
        %v1337 = vsel %vm842, %v1336, 0.0
        %1338 = vadd.xlane.f32.xlu0 %v1337
        %v1339 = vpop.xlane.xlu0 %1338
        %v1340 = vrcp.pop %v1339
        %v1341 = vmul.f32 %v1336, %v1340
        %1343 = vrot.lane.b32.xlu0 %v1027, 16
        %v1344 = vpop.permute.xlu0 %1343
        %1347 = vrot.lane.b32.xlu0 %v1184, 32
        %v1348 = vpop.permute.xlu0 %1347
        %1351 = vrot.lane.b32.xlu0 %v1341, 48
        %v1352 = vpop.permute.xlu0 %1351
        %v1354 = vsel %vm842, %v854, %v1344
        %v1355 = vsel %vm557, %v1354, %v1348
        %vm1356 = vcmask 392192
        %v1357 = vsel %vm1356, %v1355, %v1352
        %v1358 = vpack.c.bf16 %v1357, %v1357
        %v1359 = vld [vmem:[%s7] sm:$0xf]
        %v1360 = vld [vmem:[%s7 + $0x4] sm:$0xf]
        %v1361 = vld [vmem:[%s7 + $0x8] sm:$0xf]
        %v1362 = vld [vmem:[%s7 + $0xc] sm:$0xf]
        %v1363 = vld [vmem:[%s7 + $0x10] sm:$0xf]
        %v1364 = vld [vmem:[%s7 + $0x14] sm:$0xf]
        %v1365 = vld [vmem:[%s7 + $0x18] sm:$0xf]
        %v1366 = vld [vmem:[%s7 + $0x1c] sm:$0xf]
        %v1367 = vld [vmem:[%s8] sm:$0x1]
        %v1369 = vperm.slane %v1367, 0
        %v1379 = vunpack.c.l.b16 %v1359
        %v1380 = vunpack.c.l.b16 %v1360
        %v1381 = vunpack.c.l.b16 %v1361
        %v1382 = vunpack.c.l.b16 %v1362
        %v1383 = vunpack.c.l.b16 %v1363
        %v1384 = vunpack.c.l.b16 %v1364
        %v1385 = vunpack.c.l.b16 %v1365
        %v1386 = vunpack.c.l.b16 %v1366
        %v1387 = vpack.c.b16 %v1380, %v1379
        %v1388 = vpack.c.b16 %v1382, %v1381
        %v1389 = vpack.c.b16 %v1384, %v1383
        %v1390 = vpack.c.b16 %v1386, %v1385
        %vm1395 = vcmask 523264
        %v1397 = vsel %vm1395, %v1358, 0
        %1399 = vmatpush.bf16.msra.mxu0 0
        %1400 = vmatpush.bf16.msra.mxu0 0
        %1401 = vmatpush.bf16.msra.mxu0 0
        %1402 = vmatpush.bf16.msra.mxu0 0
        %1403 = vmatpush.bf16.msra.mxu0 %v1390
        %1404 = vmatpush.bf16.msra.mxu0 %v1389
        %1405 = vmatpush.bf16.msra.mxu0 %v1388
        %1406 = vmatpush.bf16.msra.mxu0 %v1387
        %1407 = vmatmul.bf16.gmra.mxu0 %v1397
        %v1408 = vpop.f32.mrf.mxu0
        %v1409 = vadd.f32 %v1369, %v1408
        %v1410 = vpop.f32.mrf.mxu0
        %1411 = vdwg.mxu0
        %v1412 = vadd.f32 %v1409, %v533
        %v1413 = vsel %vm557, %v1412, 0.0
        %1414 = vadd.xlane.f32.xlu0 %v1413
        %v1415 = vpop.xlane.xlu0 %1414
        %v1416 = vrcp.pop 32.0
        %v1417 = vmul.f32 32.0, %v1416
        %v1418 = vsub.f32 1.0, %v1417
        %v1419 = vmul.f32 %v1416, %v1418
        %v1420 = vadd.f32 %v1416, %v1419
        %vm1421 = vweird.f32 %v1416
        %v1422 = vsel %vm1421, %v1416, %v1420
        %v1423 = vmul.f32 %v1415, %v1422
        %v1424 = vsub.f32 %v1412, %v1423
        %v1425 = vmul.f32 %v1424, %v1424
        %v1426 = vsel %vm557, %v1425, 0.0
        %1427 = vadd.xlane.f32.xlu0 %v1426
        %v1428 = vpop.xlane.xlu0 %1427
        %v1429 = vmul.f32 %v1428, %v1422
        %v1430 = vadd.f32 %v1429, 1e-05
        %v1431 = vrsqrt.pop %v1430
        %v1432 = vmul.f32 %v1431, %v1430
        %v1433 = vmul.f32 %v1432, %v1431
        %v1434 = vmul.f32 0.5, %v1433
        %v1435 = vsub.f32 1.5, %v1434
        %v1436 = vmul.f32 %v1431, %v1435
        %vm1437 = vweird.f32 %v1430
        %vm1438 = vweird.f32 %v1431
        %vm1439 = vmor %vm1437, %vm1438
        %v1440 = vsel %vm1439, %v1431, %v1436
        %v1441 = vmul.f32 %v1424, %v1440
        %v1442 = vld [vmem:[%s9] sm:$0x1]
        %v1444 = vperm.slane %v1442, 0
        %v1446 = vmul.f32 %v1441, %v1444
        %v1447 = vld [vmem:[%s10] sm:$0x1]
        %v1449 = vperm.slane %v1447, 0
        %v1451 = vadd.f32 %v1446, %v1449
        %v1452 = vpack.c.bf16 %v1451, %v1451
        %v1453 = vld [vmem:[%s11] sm:$0xf]
        %v1454 = vld [vmem:[%s11 + $0x4] sm:$0xf]
        %v1455 = vld [vmem:[%s11 + $0x8] sm:$0xf]
        %v1456 = vld [vmem:[%s11 + $0xc] sm:$0xf]
        %v1461 = vunpack.c.l.b16 %v1453
        %v1462 = vunpack.c.l.b16 %v1454
        %v1463 = vunpack.c.l.b16 %v1455
        %v1464 = vunpack.c.l.b16 %v1456
        %v1465 = vpack.c.b16 %v1462, %v1461
        %v1466 = vpack.c.b16 %v1464, %v1463
        %v1470 = vsel %vm557, %v1452, 0
        %1472 = vmatpush.bf16.msra.mxu0 0
        %1473 = vmatpush.bf16.msra.mxu0 0
        %1474 = vmatpush.bf16.msra.mxu0 0
        %1475 = vmatpush.bf16.msra.mxu0 0
        %1476 = vmatpush.bf16.msra.mxu0 0
        %1477 = vmatpush.bf16.msra.mxu0 0
        %1478 = vmatpush.bf16.msra.mxu0 %v1466
        %1479 = vmatpush.bf16.msra.mxu0 %v1465
        %1480 = vmatmul.bf16.gmra.mxu0 %v1470
        %v1481 = vpop.f32.mrf.mxu0
        %v1482 = vadd.f32 0.0, %v1481
        %v1483 = vpop.f32.mrf.mxu0
        %1484 = vdwg.mxu0
        %v1485 = vmul.f32 %v1482, 0.5
        %v1486 = vmul.f32 %v1482, 0.70710677
        %vm1487 = vcmp.ge.f32.partialorder %v1486, 0.0
        %v1488 = vsel %vm1487, 1.0, -1.0
        %v1489 = vand.u32 2147483647, %v1486
        %v1490 = vmul.f32 %v1489, 0.3275911
        %v1491 = vadd.f32 %v1490, 1.0
        %v1492 = vrcp.pop %v1491
        %v1493 = vmul.f32 %v1491, %v1492
        %v1494 = vsub.f32 2.0, %v1493
        %v1495 = vmul.f32 %v1492, %v1494
        %v1496 = vmul.f32 %v1495, 1.0614054
        %v1497 = vadd.f32 %v1496, -1.4531521
        %v1498 = vmul.f32 %v1497, %v1495
        %v1499 = vadd.f32 %v1498, 1.4214138
        %v1500 = vmul.f32 %v1499, %v1495
        %v1501 = vadd.f32 %v1500, -0.28449672
        %v1502 = vmul.f32 %v1501, %v1495
        %v1503 = vadd.f32 %v1502, 0.2548296
        %v1504 = vmul.f32 %v1503, %v1495
        %v1505 = vsub.f32 0.0, %v1489
        %v1506 = vmul.f32 %v1505, %v1489
        %v1507 = vmul.f32 %v1506, 1.442695
        %v1508 = vpow.pop %v1507
        %v1509 = vmul.f32 %v1504, %v1508
        %v1510 = vsub.f32 1.0, %v1509
        %v1511 = vmul.f32 %v1488, %v1510
        %v1512 = vadd.f32 %v1511, 1.0
        %v1513 = vmul.f32 %v1485, %v1512
        %v1514 = vpack.c.bf16 %v1513, %v1513
        %v1515 = vld [vmem:[%s12] sm:$0xf]
        %v1516 = vld [vmem:[%s12 + $0x4] sm:$0xf]
        %v1517 = vld [vmem:[%s12 + $0x8] sm:$0xf]
        %v1518 = vld [vmem:[%s12 + $0xc] sm:$0xf]
        %v1519 = vld [vmem:[%s12 + $0x10] sm:$0xf]
        %v1520 = vld [vmem:[%s12 + $0x14] sm:$0xf]
        %v1521 = vld [vmem:[%s12 + $0x18] sm:$0xf]
        %v1522 = vld [vmem:[%s12 + $0x1c] sm:$0xf]
        %v1531 = vunpack.c.l.b16 %v1515
        %v1532 = vunpack.c.l.b16 %v1516
        %v1533 = vunpack.c.l.b16 %v1517
        %v1534 = vunpack.c.l.b16 %v1518
        %v1535 = vunpack.c.l.b16 %v1519
        %v1536 = vunpack.c.l.b16 %v1520
        %v1537 = vunpack.c.l.b16 %v1521
        %v1538 = vunpack.c.l.b16 %v1522
        %v1539 = vpack.c.b16 %v1532, %v1531
        %v1540 = vpack.c.b16 %v1534, %v1533
        %v1541 = vpack.c.b16 %v1536, %v1535
        %v1542 = vpack.c.b16 %v1538, %v1537
        %v1548 = vsel %vm1395, %v1514, 0
        %1550 = vmatpush.bf16.msra.mxu0 0
        %1551 = vmatpush.bf16.msra.mxu0 0
        %1552 = vmatpush.bf16.msra.mxu0 0
        %1553 = vmatpush.bf16.msra.mxu0 0
        %1554 = vmatpush.bf16.msra.mxu0 %v1542
        %1555 = vmatpush.bf16.msra.mxu0 %v1541
        %1556 = vmatpush.bf16.msra.mxu0 %v1540
        %1557 = vmatpush.bf16.msra.mxu0 %v1539
        %1558 = vmatmul.bf16.gmra.mxu0 %v1548
        %v1559 = vpop.f32.mrf.mxu0
        %v1560 = vadd.f32 %v1451, %v1559
        %v1561 = vpop.f32.mrf.mxu0
        %1562 = vdwg.mxu0
        %v1563 = vsel %vm557, %v1560, 0.0
        %1564 = vadd.xlane.f32.xlu0 %v1563
        %v1565 = vpop.xlane.xlu0 %1564
        %v1566 = vmul.f32 %v1565, %v1422
        %v1567 = vsub.f32 %v1560, %v1566
        %v1568 = vmul.f32 %v1567, %v1567
        %v1569 = vsel %vm557, %v1568, 0.0
        %1570 = vadd.xlane.f32.xlu0 %v1569
        %v1571 = vpop.xlane.xlu0 %1570
        %v1572 = vmul.f32 %v1571, %v1422
        %v1573 = vadd.f32 %v1572, 1e-05
        %v1574 = vrsqrt.pop %v1573
        %v1575 = vmul.f32 %v1574, %v1573
        %v1576 = vmul.f32 %v1575, %v1574
        %v1577 = vmul.f32 0.5, %v1576
        %v1578 = vsub.f32 1.5, %v1577
        %v1579 = vmul.f32 %v1574, %v1578
        %vm1580 = vweird.f32 %v1573
        %vm1581 = vweird.f32 %v1574
        %vm1582 = vmor %vm1580, %vm1581
        %v1583 = vsel %vm1582, %v1574, %v1579
        %v1584 = vmul.f32 %v1567, %v1583
        %v1585 = vld [vmem:[%s13] sm:$0x1]
        %v1587 = vperm.slane %v1585, 0
        %v1589 = vmul.f32 %v1584, %v1587
        %v1590 = vld [vmem:[%s14] sm:$0x1]
        %v1592 = vperm.slane %v1590, 0
        %v1594 = vadd.f32 %v1589, %v1592
        %1595 = vst.msk [vmem:[%s516] sm:$0xff] %vm557, %v1594
        %s1596 = sand.u32 %s367, 1
        %s1597 = scalar_lea.sflag [#allocation3], %s1596
        %s1598 = sand.u32 %s367, 1
        %s1599 = smul.addr %s1598, 8
        %s1600 = scalar_lea.vmem [#allocation2], %s1599
        // Predicated region
        $region81: #{_gatv2_forward_impl.1} parent=79 // pred_check
          %p1601 = pneg %p377
        $region82: #{_gatv2_forward_impl.1} parent=79 // pred_check_branch
          %1603 = sbr.rel (%p1601) target = $region84
        $region83: #{_gatv2_forward_impl.1} parent=79 // pred_region
          %1605 = vsyncadd %s1597, 0
          %s1606 = smul.addr %s29, 8
          %s1607 = scalar_lea.hbm %s15, %s1606
          %s1609 = sshll.u32 %s1600, 4
          %s1610 = int_to_ptr.vmem [resolvable:$true] %s1609
          %s1611 = sshll.u32 %s1607, 4
          %s1612 = int_to_ptr.hbm [resolvable:$true] %s1611
          %1614 = dma.vmem_to_hbm [thread:$0]  %s1610, 128, %s1612, %s1597
        $region84: #{_gatv2_forward_impl.1} parent=79 // pred_fallthru
          _
      $region80: #{_gatv2_forward_impl.1} parent=5 // pred_fallthru
        _
      %p1615 = scmp.le.s32.totalorder 2, %s24
      // Predicated region
      $region85: #{_gatv2_forward_impl.1} parent=5 // pred_check
        %p1616 = pneg %p1615
      $region86: #{_gatv2_forward_impl.1} parent=5 // pred_check_branch
        %1618 = sbr.rel (%p1616) target = $region88
      $region87: #{_gatv2_forward_impl.1} parent=5 // pred_region
        %s1619 = ssub.s32 %s24, 2
        // Predicated region
        $region89: #{_gatv2_forward_impl.1} parent=87 // pred_check
          %p1620 = pneg %p383
        $region90: #{_gatv2_forward_impl.1} parent=87 // pred_check_branch
          %1622 = sbr.rel (%p1620) target = $region92
        $region91: #{_gatv2_forward_impl.1} parent=87 // pred_region
          %s1623 = sand.u32 %s368, 1
          %s1624 = scalar_lea.sflag [#allocation3], %s1623
          %s1625 = sand.u32 %s368, 1
          %s1626 = smul.addr %s1625, 8
          %s1627 = scalar_lea.vmem [#allocation2], %s1626
          %1629 = dma.done %s1624, 128
        $region92: #{_gatv2_forward_impl.1} parent=87 // pred_fallthru
          _
      $region88: #{_gatv2_forward_impl.1} parent=5 // pred_fallthru
        _
    $region6: #{_gatv2_forward_impl.1} parent=1 // loop_footer
      %s28 = sadd.s32 1, %s24
    $region7: #{_gatv2_forward_impl.1} parent=1 // loop_footer_branch
      %23 = sbr.rel target = $region3
    $region8: #{_gatv2_forward_impl.1} parent=1 // loop_exit
      _
    %1630 = vsyncpa [#allocation3], 1
    %s1631 = scalar_lea.sflag [#allocation3], 1
    %1632 = vsyncpa %s1631, 1

</llo_original>
